<compile_context>
chip_gen: v6e
topology: v6e:2x2x1
jax: 0.10.0
libtpu: 0.0.40
codegen_flags: <defaults>
</compile_context>

<pallas_src>
import functools

import jax
import jax.numpy as jnp
from jax.experimental import pallas as pl
from jax.experimental.pallas import tpu as pltpu


_dot = functools.partial(jnp.dot, preferred_element_type=jnp.float32)


# ----------------------------------------------------------------------------
# Fused kernel
# ----------------------------------------------------------------------------
def _gcn_fused_kernel(
    src_row_ref, dst_row_ref, src_col_ref, dst_col_ref,      # edge indices
    node_ref, feat_ref, edge_ref,                            # embeddings
    p_node_ref, p_edge_ref, bp_ref,                          # P split + bias
    q_self_ref, q_msg_ref, bq_ref,                           # Q split + bias
    w_edge_ref, w_src_ref, w_dst_ref, bw_ref,                # W split + bias
    node_out_ref, feat_out_ref, edge_out_ref,                # outputs
):
    f32 = jnp.float32
    E = edge_ref.shape[0]
    bs = node_ref.shape[0]
    nf = feat_ref.shape[0]

    # ---- one-hot scatter / gather matrices (VPU iota + compare) -------------
    s_src = (jax.lax.broadcasted_iota(jnp.int32, (bs, E), 0)
             == src_row_ref[...]).astype(f32)                 # (bs, E): scatter by src
    s_dst = (jax.lax.broadcasted_iota(jnp.int32, (nf, E), 0)
             == dst_row_ref[...]).astype(f32)                 # (nf, E): scatter by dst
    g_src = (jax.lax.broadcasted_iota(jnp.int32, (E, bs), 1)
             == src_col_ref[...]).astype(f32)                 # (E, bs): gather by src
    g_dst = (jax.lax.broadcasted_iota(jnp.int32, (E, nf), 1)
             == dst_col_ref[...]).astype(f32)                 # (E, nf): gather by dst

    edge = edge_ref[...]
    node = node_ref[...]
    feat = feat_ref[...]

    # ---- shared partial: edge_emb @ P_edge + bP (reused by both passes) ------
    xpe = _dot(edge, p_edge_ref[...]) + bp_ref[...]           # (E, M)

    # ---- message to nodes: relu(feature_emb[dst] @ P_node + xpe) -------------
    fp = _dot(feat, p_node_ref[...])                          # (nf, M)
    msg = jnp.maximum(_dot(g_dst, fp) + xpe, 0.0)             # (E, M)

    # ---- message to features: relu(node_emb[src] @ P_node + xpe) -------------
    ap = _dot(node, p_node_ref[...])                          # (bs, M)
    msg_f = jnp.maximum(_dot(g_src, ap) + xpe, 0.0)           # (E, M)

    # ---- scatter_mean (one-hot MXU sum; empty segments -> 0) -----------------
    cnt_src = jnp.sum(s_src, axis=1, keepdims=True)           # (bs, 1)
    cnt_dst = jnp.sum(s_dst, axis=1, keepdims=True)           # (nf, 1)
    msg_mean = jnp.where(
        cnt_src > 0.0, _dot(s_src, msg) / jnp.maximum(cnt_src, 1.0), 0.0)
    msg_f_mean = jnp.where(
        cnt_dst > 0.0, _dot(s_dst, msg_f) / jnp.maximum(cnt_dst, 1.0), 0.0)

    # ---- node / feature update: concat(x, m) @ Q == x @ Q_self + m @ Q_msg ---
    node_out = (_dot(node, q_self_ref[...]) + _dot(msg_mean, q_msg_ref[...])
                + bq_ref[...])                                # (bs, out_node)
    feat_out = (_dot(feat, q_self_ref[...]) + _dot(msg_f_mean, q_msg_ref[...])
                + bq_ref[...])                                # (nf, out_node)
    node_out_ref[...] = node_out
    feat_out_ref[...] = feat_out

    # ---- edge update: dense matmul on the small side, then one-hot gather ----
    # concat(edge, node_out[src], feat_out[dst]) @ W
    #   == edge @ W_edge + (node_out @ W_src)[src] + (feat_out @ W_dst)[dst]
    nw = _dot(node_out, w_src_ref[...])                       # (bs, out_edge)
    fw = _dot(feat_out, w_dst_ref[...])                       # (nf, out_edge)
    edge_out_ref[...] = (_dot(edge, w_edge_ref[...])
                         + _dot(g_src, nw) + _dot(g_dst, fw) + bw_ref[...])


# ----------------------------------------------------------------------------
# Wrapper
# ----------------------------------------------------------------------------
def _vmem():
    return pl.BlockSpec(memory_space=pltpu.MemorySpace.VMEM)


@jax.jit
def gcn_block_forward(node_emb, edge_emb, feature_emb, edge_index, params):
    P, bP, Q, bQ, W, bW = params
    bs, in_node = node_emb.shape
    nf = feature_emb.shape[0]
    E, in_edge = edge_emb.shape
    M = P.shape[1]
    out_node = Q.shape[1]
    out_edge = W.shape[1]

    src = edge_index[0].astype(jnp.int32)
    dst = edge_index[1].astype(jnp.int32)
    src_row = src.reshape(1, E)
    dst_row = dst.reshape(1, E)
    src_col = src.reshape(E, 1)
    dst_col = dst.reshape(E, 1)

    # Static weight splits replace every concatenation in the forward.
    p_node, p_edge = P[:in_node], P[in_node:]
    q_self, q_msg = Q[:in_node], Q[in_node:]
    w_edge = W[:in_edge]
    w_src = W[in_edge:in_edge + out_node]
    w_dst = W[in_edge + out_node:]

    inputs = (
        src_row, dst_row, src_col, dst_col,
        node_emb, feature_emb, edge_emb,
        p_node, p_edge, bP.reshape(1, M),
        q_self, q_msg, bQ.reshape(1, out_node),
        w_edge, w_src, w_dst, bW.reshape(1, out_edge),
    )

    out_shape = (
        jax.ShapeDtypeStruct((bs, out_node), jnp.float32),
        jax.ShapeDtypeStruct((nf, out_node), jnp.float32),
        jax.ShapeDtypeStruct((E, out_edge), jnp.float32),
    )

    # Rough FLOP / byte estimates for XLA's scheduler around the custom call.
    flops = 2 * (
        E * in_edge * M
        + (bs + nf) * in_node * M
        + 2 * E * (bs + nf) * M                     # one-hot gathers + scatters
        + (bs + nf) * (in_node * out_node + M * out_node)
        + E * in_edge * out_edge
        + (bs + nf) * out_node * out_edge
        + E * (bs + nf) * out_edge
    )
    in_bytes = sum(int(x.size) * x.dtype.itemsize for x in inputs)
    out_bytes = 4 * (bs * out_node + nf * out_node + E * out_edge)
    # VMEM needed: I/O + one-hots + per-edge intermediates, with slack.
    work_bytes = 4 * (2 * E * (bs + nf) + E * (3 * M + out_edge))
    vmem_limit = int(min(100 * 2**20,
                         max(32 * 2**20, 8 * (in_bytes + out_bytes + work_bytes))))

    node_out, feat_out, edge_out = pl.pallas_call(
        _gcn_fused_kernel,
        out_shape=out_shape,
        in_specs=[_vmem() for _ in range(len(inputs))],
        out_specs=(_vmem(), _vmem(), _vmem()),
        compiler_params=pltpu.CompilerParams(vmem_limit_bytes=vmem_limit),
        cost_estimate=pl.CostEstimate(
            flops=int(flops),
            transcendentals=0,
            bytes_accessed=int(in_bytes + out_bytes),
        ),
    )(*inputs)

    # Match the PyTorch module's return order: (node_emb, edge_emb, feature_emb)
    return node_out, edge_out, feat_out


# ----------------------------------------------------------------------------
# Deterministic parameter init (xavier_normal-style) + example run
# ----------------------------------------------------------------------------
def xavier_normal(key, shape):
    fan_in, fan_out = shape
    std = (2.0 / (fan_in + fan_out)) ** 0.5
    return std * jax.random.normal(key, shape, dtype=jnp.float32)


if __name__ == "__main__":
    # sizes
    in_node, in_edge = 32, 16
    out_node, out_edge = 32, 16
    msg_emb = 32
    bs, num_features, num_edges = 8, 16, 64

    key = jax.random.PRNGKey(0)
    kP, kQ, kW, k1, k2, k3, k4, k5 = jax.random.split(key, 8)

    # parameters (same shapes as the PyTorch module's __init__)
    P = xavier_normal(kP, (in_node + in_edge, msg_emb))
    Q = xavier_normal(kQ, (in_node + msg_emb, out_node))
    W = xavier_normal(kW, (in_edge + out_node + out_node, out_edge))
    bP = jnp.zeros((msg_emb,), jnp.float32)
    bQ = jnp.zeros((out_node,), jnp.float32)
    bW = jnp.zeros((out_edge,), jnp.float32)
    params = (P, bP, Q, bQ, W, bW)

    # example inputs
    node_emb = jax.random.normal(k1, (bs, in_node), dtype=jnp.float32)
    edge_emb = jax.random.normal(k2, (num_edges, in_edge), dtype=jnp.float32)
    feature_emb = jax.random.normal(k3, (num_features, in_node), dtype=jnp.float32)
    # edge_index (2, num_edges): src in [0, bs), dst in [0, num_features)
    src = jnp.concatenate(
        [jnp.arange(bs, dtype=jnp.int32),
         jax.random.randint(k4, (num_edges - bs,), 0, bs, dtype=jnp.int32)]
    )
    dst = jnp.concatenate(
        [jnp.arange(num_features, dtype=jnp.int32),
         jax.random.randint(k5, (num_edges - num_features,), 0, num_features,
                            dtype=jnp.int32)]
    )
    edge_index = jnp.stack([src, dst], axis=0)

    node_out, edge_out, feat_out = gcn_block_forward(
        node_emb, edge_emb, feature_emb, edge_index, params
    )
    jax.block_until_ready((node_out, edge_out, feat_out))

    assert node_out.shape == (bs, out_node)
    assert edge_out.shape == (num_edges, out_edge)
    assert feat_out.shape == (num_features, out_node)
    print("KERNEL_OK")
</pallas_src>

<mosaic_0001>
module attributes {stable_mosaic.version = 11 : i64} {
  func.func @_gcn_fused_kernel(%arg0: memref<1x64xi32, #tpu.memory_space<vmem>>, %arg1: memref<1x64xi32, #tpu.memory_space<vmem>>, %arg2: memref<64x1xi32, #tpu.memory_space<vmem>>, %arg3: memref<64x1xi32, #tpu.memory_space<vmem>>, %arg4: memref<8x32xf32, #tpu.memory_space<vmem>>, %arg5: memref<16x32xf32, #tpu.memory_space<vmem>>, %arg6: memref<64x16xf32, #tpu.memory_space<vmem>>, %arg7: memref<32x32xf32, #tpu.memory_space<vmem>>, %arg8: memref<16x32xf32, #tpu.memory_space<vmem>>, %arg9: memref<1x32xf32, #tpu.memory_space<vmem>>, %arg10: memref<32x32xf32, #tpu.memory_space<vmem>>, %arg11: memref<32x32xf32, #tpu.memory_space<vmem>>, %arg12: memref<1x32xf32, #tpu.memory_space<vmem>>, %arg13: memref<16x16xf32, #tpu.memory_space<vmem>>, %arg14: memref<32x16xf32, #tpu.memory_space<vmem>>, %arg15: memref<32x16xf32, #tpu.memory_space<vmem>>, %arg16: memref<1x16xf32, #tpu.memory_space<vmem>>, %arg17: memref<8x32xf32, #tpu.memory_space<vmem>>, %arg18: memref<16x32xf32, #tpu.memory_space<vmem>>, %arg19: memref<64x16xf32, #tpu.memory_space<vmem>>) attributes {dimension_semantics = [], scalar_prefetch = 0 : i64, scratch_operands = 0 : i64, tpu.core_type = #tpu.core_type<tc>} {
    %0 = tpu.iota {dimensions = array<i32: 0>} : vector<8x64xi32>
    %c0 = arith.constant 0 : index
    %c0_0 = arith.constant 0 : index
    %1 = vector.load %arg0[%c0, %c0_0] : memref<1x64xi32, #tpu.memory_space<vmem>>, vector<1x64xi32>
    %2 = vector.broadcast %1 : vector<1x64xi32> to vector<8x64xi32>
    %3 = arith.cmpi eq, %0, %2 : vector<8x64xi32>
    %4 = arith.extui %3 : vector<8x64xi1> to vector<8x64xi32>
    %5 = arith.sitofp %4 : vector<8x64xi32> to vector<8x64xf32>
    %6 = tpu.iota {dimensions = array<i32: 0>} : vector<16x64xi32>
    %c0_1 = arith.constant 0 : index
    %c0_2 = arith.constant 0 : index
    %7 = vector.load %arg1[%c0_1, %c0_2] : memref<1x64xi32, #tpu.memory_space<vmem>>, vector<1x64xi32>
    %8 = vector.broadcast %7 : vector<1x64xi32> to vector<16x64xi32>
    %9 = arith.cmpi eq, %6, %8 : vector<16x64xi32>
    %10 = arith.extui %9 : vector<16x64xi1> to vector<16x64xi32>
    %11 = arith.sitofp %10 : vector<16x64xi32> to vector<16x64xf32>
    %12 = tpu.iota {dimensions = array<i32: 1>} : vector<64x8xi32>
    %c0_3 = arith.constant 0 : index
    %c0_4 = arith.constant 0 : index
    %13 = vector.load %arg2[%c0_3, %c0_4] : memref<64x1xi32, #tpu.memory_space<vmem>>, vector<64x1xi32>
    %14 = vector.broadcast %13 : vector<64x1xi32> to vector<64x8xi32>
    %15 = arith.cmpi eq, %12, %14 : vector<64x8xi32>
    %16 = arith.extui %15 : vector<64x8xi1> to vector<64x8xi32>
    %17 = arith.sitofp %16 : vector<64x8xi32> to vector<64x8xf32>
    %18 = tpu.iota {dimensions = array<i32: 1>} : vector<64x16xi32>
    %c0_5 = arith.constant 0 : index
    %c0_6 = arith.constant 0 : index
    %19 = vector.load %arg3[%c0_5, %c0_6] : memref<64x1xi32, #tpu.memory_space<vmem>>, vector<64x1xi32>
    %20 = vector.broadcast %19 : vector<64x1xi32> to vector<64x16xi32>
    %21 = arith.cmpi eq, %18, %20 : vector<64x16xi32>
    %22 = arith.extui %21 : vector<64x16xi1> to vector<64x16xi32>
    %23 = arith.sitofp %22 : vector<64x16xi32> to vector<64x16xf32>
    %c0_7 = arith.constant 0 : index
    %c0_8 = arith.constant 0 : index
    %24 = vector.load %arg6[%c0_7, %c0_8] : memref<64x16xf32, #tpu.memory_space<vmem>>, vector<64x16xf32>
    %c0_9 = arith.constant 0 : index
    %c0_10 = arith.constant 0 : index
    %25 = vector.load %arg4[%c0_9, %c0_10] : memref<8x32xf32, #tpu.memory_space<vmem>>, vector<8x32xf32>
    %c0_11 = arith.constant 0 : index
    %c0_12 = arith.constant 0 : index
    %26 = vector.load %arg5[%c0_11, %c0_12] : memref<16x32xf32, #tpu.memory_space<vmem>>, vector<16x32xf32>
    %c0_13 = arith.constant 0 : index
    %c0_14 = arith.constant 0 : index
    %27 = vector.load %arg8[%c0_13, %c0_14] : memref<16x32xf32, #tpu.memory_space<vmem>>, vector<16x32xf32>
    %cst = arith.constant dense<0.000000e+00> : vector<64x32xf32>
    %28 = tpu.matmul %24, %27, %cst {dimension_numbers = #tpu.dot_dimension_numbers<[1], [0], [0], [1], [0, 0, 1, 1], [], []>} : vector<64x16xf32>, vector<16x32xf32>, vector<64x32xf32> -> vector<64x32xf32>
    %c0_15 = arith.constant 0 : index
    %c0_16 = arith.constant 0 : index
    %29 = vector.load %arg9[%c0_15, %c0_16] : memref<1x32xf32, #tpu.memory_space<vmem>>, vector<1x32xf32>
    %30 = vector.broadcast %29 : vector<1x32xf32> to vector<64x32xf32>
    %31 = arith.addf %28, %30 : vector<64x32xf32>
    %c0_17 = arith.constant 0 : index
    %c0_18 = arith.constant 0 : index
    %32 = vector.load %arg7[%c0_17, %c0_18] : memref<32x32xf32, #tpu.memory_space<vmem>>, vector<32x32xf32>
    %cst_19 = arith.constant dense<0.000000e+00> : vector<16x32xf32>
    %33 = tpu.matmul %26, %32, %cst_19 {dimension_numbers = #tpu.dot_dimension_numbers<[1], [0], [0], [1], [0, 0, 1, 1], [], []>} : vector<16x32xf32>, vector<32x32xf32>, vector<16x32xf32> -> vector<16x32xf32>
    %cst_20 = arith.constant dense<0.000000e+00> : vector<64x32xf32>
    %34 = tpu.matmul %23, %33, %cst_20 {dimension_numbers = #tpu.dot_dimension_numbers<[1], [0], [0], [1], [0, 0, 1, 1], [], []>} : vector<64x16xf32>, vector<16x32xf32>, vector<64x32xf32> -> vector<64x32xf32>
    %35 = arith.addf %34, %31 : vector<64x32xf32>
    %cst_21 = arith.constant 0.000000e+00 : f32
    %36 = vector.broadcast %cst_21 : f32 to vector<64x32xf32>
    %37 = arith.maximumf %35, %36 : vector<64x32xf32>
    %c0_22 = arith.constant 0 : index
    %c0_23 = arith.constant 0 : index
    %38 = vector.load %arg7[%c0_22, %c0_23] : memref<32x32xf32, #tpu.memory_space<vmem>>, vector<32x32xf32>
    %cst_24 = arith.constant dense<0.000000e+00> : vector<8x32xf32>
    %39 = tpu.matmul %25, %38, %cst_24 {dimension_numbers = #tpu.dot_dimension_numbers<[1], [0], [0], [1], [0, 0, 1, 1], [], []>} : vector<8x32xf32>, vector<32x32xf32>, vector<8x32xf32> -> vector<8x32xf32>
    %cst_25 = arith.constant dense<0.000000e+00> : vector<64x32xf32>
    %40 = tpu.matmul %17, %39, %cst_25 {dimension_numbers = #tpu.dot_dimension_numbers<[1], [0], [0], [1], [0, 0, 1, 1], [], []>} : vector<64x8xf32>, vector<8x32xf32>, vector<64x32xf32> -> vector<64x32xf32>
    %41 = arith.addf %40, %31 : vector<64x32xf32>
    %cst_26 = arith.constant 0.000000e+00 : f32
    %42 = vector.broadcast %cst_26 : f32 to vector<64x32xf32>
    %43 = arith.maximumf %41, %42 : vector<64x32xf32>
    %cst_27 = arith.constant dense<0.000000e+00> : vector<8xf32>
    %44 = vector.multi_reduction <add>, %5, %cst_27 [1] : vector<8x64xf32> to vector<8xf32>
    %45 = vector.shape_cast %44 : vector<8xf32> to vector<8x1xf32>
    %cst_28 = arith.constant dense<0.000000e+00> : vector<16xf32>
    %46 = vector.multi_reduction <add>, %11, %cst_28 [1] : vector<16x64xf32> to vector<16xf32>
    %47 = vector.shape_cast %46 : vector<16xf32> to vector<16x1xf32>
    %cst_29 = arith.constant 0.000000e+00 : f32
    %48 = vector.broadcast %cst_29 : f32 to vector<8x1xf32>
    %49 = arith.cmpf ogt, %45, %48 : vector<8x1xf32>
    %cst_30 = arith.constant dense<0.000000e+00> : vector<8x32xf32>
    %50 = tpu.matmul %5, %37, %cst_30 {dimension_numbers = #tpu.dot_dimension_numbers<[1], [0], [0], [1], [0, 0, 1, 1], [], []>} : vector<8x64xf32>, vector<64x32xf32>, vector<8x32xf32> -> vector<8x32xf32>
    %cst_31 = arith.constant 1.000000e+00 : f32
    %51 = vector.broadcast %cst_31 : f32 to vector<8x1xf32>
    %52 = arith.maximumf %45, %51 : vector<8x1xf32>
    %53 = vector.broadcast %52 : vector<8x1xf32> to vector<8x32xf32>
    %54 = arith.divf %50, %53 : vector<8x32xf32>
    %cst_32 = arith.constant 0.000000e+00 : f32
    %55 = vector.shape_cast %49 : vector<8x1xi1> to vector<8x1xi1>
    %56 = vector.broadcast %55 : vector<8x1xi1> to vector<8x32xi1>
    %57 = vector.broadcast %cst_32 : f32 to vector<8x32xf32>
    %58 = arith.select %56, %54, %57 : vector<8x32xi1>, vector<8x32xf32>
    %cst_33 = arith.constant 0.000000e+00 : f32
    %59 = vector.broadcast %cst_33 : f32 to vector<16x1xf32>
    %60 = arith.cmpf ogt, %47, %59 : vector<16x1xf32>
    %cst_34 = arith.constant dense<0.000000e+00> : vector<16x32xf32>
    %61 = tpu.matmul %11, %43, %cst_34 {dimension_numbers = #tpu.dot_dimension_numbers<[1], [0], [0], [1], [0, 0, 1, 1], [], []>} : vector<16x64xf32>, vector<64x32xf32>, vector<16x32xf32> -> vector<16x32xf32>
    %cst_35 = arith.constant 1.000000e+00 : f32
    %62 = vector.broadcast %cst_35 : f32 to vector<16x1xf32>
    %63 = arith.maximumf %47, %62 : vector<16x1xf32>
    %64 = vector.broadcast %63 : vector<16x1xf32> to vector<16x32xf32>
    %65 = arith.divf %61, %64 : vector<16x32xf32>
    %cst_36 = arith.constant 0.000000e+00 : f32
    %66 = vector.shape_cast %60 : vector<16x1xi1> to vector<16x1xi1>
    %67 = vector.broadcast %66 : vector<16x1xi1> to vector<16x32xi1>
    %68 = vector.broadcast %cst_36 : f32 to vector<16x32xf32>
    %69 = arith.select %67, %65, %68 : vector<16x32xi1>, vector<16x32xf32>
    %c0_37 = arith.constant 0 : index
    %c0_38 = arith.constant 0 : index
    %70 = vector.load %arg10[%c0_37, %c0_38] : memref<32x32xf32, #tpu.memory_space<vmem>>, vector<32x32xf32>
    %cst_39 = arith.constant dense<0.000000e+00> : vector<8x32xf32>
    %71 = tpu.matmul %25, %70, %cst_39 {dimension_numbers = #tpu.dot_dimension_numbers<[1], [0], [0], [1], [0, 0, 1, 1], [], []>} : vector<8x32xf32>, vector<32x32xf32>, vector<8x32xf32> -> vector<8x32xf32>
    %c0_40 = arith.constant 0 : index
    %c0_41 = arith.constant 0 : index
    %72 = vector.load %arg11[%c0_40, %c0_41] : memref<32x32xf32, #tpu.memory_space<vmem>>, vector<32x32xf32>
    %cst_42 = arith.constant dense<0.000000e+00> : vector<8x32xf32>
    %73 = tpu.matmul %58, %72, %cst_42 {dimension_numbers = #tpu.dot_dimension_numbers<[1], [0], [0], [1], [0, 0, 1, 1], [], []>} : vector<8x32xf32>, vector<32x32xf32>, vector<8x32xf32> -> vector<8x32xf32>
    %74 = arith.addf %71, %73 : vector<8x32xf32>
    %c0_43 = arith.constant 0 : index
    %c0_44 = arith.constant 0 : index
    %75 = vector.load %arg12[%c0_43, %c0_44] : memref<1x32xf32, #tpu.memory_space<vmem>>, vector<1x32xf32>
    %76 = vector.broadcast %75 : vector<1x32xf32> to vector<8x32xf32>
    %77 = arith.addf %74, %76 : vector<8x32xf32>
    %c0_45 = arith.constant 0 : index
    %c0_46 = arith.constant 0 : index
    %78 = vector.load %arg10[%c0_45, %c0_46] : memref<32x32xf32, #tpu.memory_space<vmem>>, vector<32x32xf32>
    %cst_47 = arith.constant dense<0.000000e+00> : vector<16x32xf32>
    %79 = tpu.matmul %26, %78, %cst_47 {dimension_numbers = #tpu.dot_dimension_numbers<[1], [0], [0], [1], [0, 0, 1, 1], [], []>} : vector<16x32xf32>, vector<32x32xf32>, vector<16x32xf32> -> vector<16x32xf32>
    %c0_48 = arith.constant 0 : index
    %c0_49 = arith.constant 0 : index
    %80 = vector.load %arg11[%c0_48, %c0_49] : memref<32x32xf32, #tpu.memory_space<vmem>>, vector<32x32xf32>
    %cst_50 = arith.constant dense<0.000000e+00> : vector<16x32xf32>
    %81 = tpu.matmul %69, %80, %cst_50 {dimension_numbers = #tpu.dot_dimension_numbers<[1], [0], [0], [1], [0, 0, 1, 1], [], []>} : vector<16x32xf32>, vector<32x32xf32>, vector<16x32xf32> -> vector<16x32xf32>
    %82 = arith.addf %79, %81 : vector<16x32xf32>
    %c0_51 = arith.constant 0 : index
    %c0_52 = arith.constant 0 : index
    %83 = vector.load %arg12[%c0_51, %c0_52] : memref<1x32xf32, #tpu.memory_space<vmem>>, vector<1x32xf32>
    %84 = vector.broadcast %83 : vector<1x32xf32> to vector<16x32xf32>
    %85 = arith.addf %82, %84 : vector<16x32xf32>
    %c0_53 = arith.constant 0 : index
    %c0_54 = arith.constant 0 : index
    %86 = vector.load %arg17[%c0_53, %c0_54] : memref<8x32xf32, #tpu.memory_space<vmem>>, vector<8x32xf32>
    tpu.vector_store %arg17[%c0_53, %c0_54], %77 {strides = array<i32>} : memref<8x32xf32, #tpu.memory_space<vmem>>, vector<8x32xf32>,
    %c0_55 = arith.constant 0 : index
    %c0_56 = arith.constant 0 : index
    %87 = vector.load %arg18[%c0_55, %c0_56] : memref<16x32xf32, #tpu.memory_space<vmem>>, vector<16x32xf32>
    tpu.vector_store %arg18[%c0_55, %c0_56], %85 {strides = array<i32>} : memref<16x32xf32, #tpu.memory_space<vmem>>, vector<16x32xf32>,
    %c0_57 = arith.constant 0 : index
    %c0_58 = arith.constant 0 : index
    %88 = vector.load %arg14[%c0_57, %c0_58] : memref<32x16xf32, #tpu.memory_space<vmem>>, vector<32x16xf32>
    %cst_59 = arith.constant dense<0.000000e+00> : vector<8x16xf32>
    %89 = tpu.matmul %77, %88, %cst_59 {dimension_numbers = #tpu.dot_dimension_numbers<[1], [0], [0], [1], [0, 0, 1, 1], [], []>} : vector<8x32xf32>, vector<32x16xf32>, vector<8x16xf32> -> vector<8x16xf32>
    %c0_60 = arith.constant 0 : index
    %c0_61 = arith.constant 0 : index
    %90 = vector.load %arg15[%c0_60, %c0_61] : memref<32x16xf32, #tpu.memory_space<vmem>>, vector<32x16xf32>
    %cst_62 = arith.constant dense<0.000000e+00> : vector<16x16xf32>
    %91 = tpu.matmul %85, %90, %cst_62 {dimension_numbers = #tpu.dot_dimension_numbers<[1], [0], [0], [1], [0, 0, 1, 1], [], []>} : vector<16x32xf32>, vector<32x16xf32>, vector<16x16xf32> -> vector<16x16xf32>
    %c0_63 = arith.constant 0 : index
    %c0_64 = arith.constant 0 : index
    %92 = vector.load %arg13[%c0_63, %c0_64] : memref<16x16xf32, #tpu.memory_space<vmem>>, vector<16x16xf32>
    %cst_65 = arith.constant dense<0.000000e+00> : vector<64x16xf32>
    %93 = tpu.matmul %24, %92, %cst_65 {dimension_numbers = #tpu.dot_dimension_numbers<[1], [0], [0], [1], [0, 0, 1, 1], [], []>} : vector<64x16xf32>, vector<16x16xf32>, vector<64x16xf32> -> vector<64x16xf32>
    %cst_66 = arith.constant dense<0.000000e+00> : vector<64x16xf32>
    %94 = tpu.matmul %17, %89, %cst_66 {dimension_numbers = #tpu.dot_dimension_numbers<[1], [0], [0], [1], [0, 0, 1, 1], [], []>} : vector<64x8xf32>, vector<8x16xf32>, vector<64x16xf32> -> vector<64x16xf32>
    %95 = arith.addf %93, %94 : vector<64x16xf32>
    %cst_67 = arith.constant dense<0.000000e+00> : vector<64x16xf32>
    %96 = tpu.matmul %23, %91, %cst_67 {dimension_numbers = #tpu.dot_dimension_numbers<[1], [0], [0], [1], [0, 0, 1, 1], [], []>} : vector<64x16xf32>, vector<16x16xf32>, vector<64x16xf32> -> vector<64x16xf32>
    %97 = arith.addf %95, %96 : vector<64x16xf32>
    %c0_68 = arith.constant 0 : index
    %c0_69 = arith.constant 0 : index
    %98 = vector.load %arg16[%c0_68, %c0_69] : memref<1x16xf32, #tpu.memory_space<vmem>>, vector<1x16xf32>
    %99 = vector.broadcast %98 : vector<1x16xf32> to vector<64x16xf32>
    %100 = arith.addf %97, %99 : vector<64x16xf32>
    %c0_70 = arith.constant 0 : index
    %c0_71 = arith.constant 0 : index
    %101 = vector.load %arg19[%c0_70, %c0_71] : memref<64x16xf32, #tpu.memory_space<vmem>>, vector<64x16xf32>
    tpu.vector_store %arg19[%c0_70, %c0_71], %100 {strides = array<i32>} : memref<64x16xf32, #tpu.memory_space<vmem>>, vector<64x16xf32>,
    return
  }
}

</mosaic_0001>

<llo_original>
// kernel: gcn_block_forward.1
$region0: #{gcn_block_forward.1}
  #allocation0 [shape = 'u32[]', space=smem, size = 0x4, offset = 0x4, fixed_abs, tag = 'smem constant byte address 0x4 - core index']
  #allocation1 [shape = 'u32[144,128]{1,0:T(1,128)}', space=vmem, size = 0x12000, scoped, tag = 'internal scratch']
  %s0 = inlined_call_operand.vmem [shape: s32[1,64], index: 0, kind: input, shape index: {}]
  %s1 = inlined_call_operand.vmem [shape: s32[1,64], index: 1, kind: input, shape index: {}]
  %s2 = inlined_call_operand.vmem [shape: s32[64,1], index: 2, kind: input, shape index: {}]
  %s3 = inlined_call_operand.vmem [shape: s32[64,1], index: 3, kind: input, shape index: {}]
  %s4 = inlined_call_operand.vmem [shape: f32[8,32], index: 4, kind: input, shape index: {}]
  %s5 = inlined_call_operand.vmem [shape: f32[16,32], index: 5, kind: input, shape index: {}]
  %s6 = inlined_call_operand.vmem [shape: f32[64,16], index: 6, kind: input, shape index: {}]
  %s7 = inlined_call_operand.vmem [shape: f32[32,32], index: 7, kind: input, shape index: {}]
  %s8 = inlined_call_operand.vmem [shape: f32[16,32], index: 8, kind: input, shape index: {}]
  %s9 = inlined_call_operand.vmem [shape: f32[1,32], index: 9, kind: input, shape index: {}]
  %s10 = inlined_call_operand.vmem [shape: f32[32,32], index: 10, kind: input, shape index: {}]
  %s11 = inlined_call_operand.vmem [shape: f32[32,32], index: 11, kind: input, shape index: {}]
  %s12 = inlined_call_operand.vmem [shape: f32[1,32], index: 12, kind: input, shape index: {}]
  %s13 = inlined_call_operand.vmem [shape: f32[16,16], index: 13, kind: input, shape index: {}]
  %s14 = inlined_call_operand.vmem [shape: f32[32,16], index: 14, kind: input, shape index: {}]
  %s15 = inlined_call_operand.vmem [shape: f32[32,16], index: 15, kind: input, shape index: {}]
  %s16 = inlined_call_operand.vmem [shape: f32[1,16], index: 16, kind: input, shape index: {}]
  %s17 = inlined_call_operand.hbm [shape: f32[8,32], index: 17, kind: output, shape index: {0}]
  %s18 = inlined_call_operand.hbm [shape: f32[16,32], index: 18, kind: output, shape index: {1}]
  %s19 = inlined_call_operand.vmem [shape: f32[64,16], index: 19, kind: output, shape index: {2}]
  %20 = xla_tuple %s17, %s18, %s19
  %s21 = sld [smem:[#allocation0]]
  $region94: #{gcn_block_forward.1} parent=0
    _
  %s23 = ssub.s32 1, %s21
  %s24 = scalar_select 0, %s23, %s21
  $region1: #{gcn_block_forward.1} parent=0
    #allocation2 [shape = 'u8[4096]{0}', space=vmem, size = 0x1000, scoped, tag = 'output window, operand 0, single buffered']
    #allocation3 [shape = 's32[1]{0}', space=sflag, size = 0x4, scoped, tag = 'scoped memory for gcn_block_forward.1']
    #allocation4 [shape = 'u8[8192]{0}', space=vmem, size = 0x2000, scoped, tag = 'output window, operand 1, single buffered']
    #allocation5 [shape = 's32[1]{0}', space=sflag, size = 0x4, scoped, tag = 'scoped memory for gcn_block_forward.1']
    %25 = vsyncpa [#allocation3], 0
    %26 = vsyncpa [#allocation5], 0
    // Predicated region
    $region2: #{gcn_block_forward.1} parent=1 // pred_check
      _
    $region3: #{gcn_block_forward.1} parent=1 // pred_check_branch
      %28 = sbr.rel (0) target = $region5
    $region4: #{gcn_block_forward.1} parent=1 // pred_region
      _
    $region5: #{gcn_block_forward.1} parent=1 // pred_fallthru
      _
    // Predicated region
    $region6: #{gcn_block_forward.1} parent=1 // pred_check
      _
    $region7: #{gcn_block_forward.1} parent=1 // pred_check_branch
      %30 = sbr.rel (0) target = $region9
    $region8: #{gcn_block_forward.1} parent=1 // pred_region
      _
    $region9: #{gcn_block_forward.1} parent=1 // pred_fallthru
      _
    // Predicated region
    $region10: #{gcn_block_forward.1} parent=1 // pred_check
      _
    $region11: #{gcn_block_forward.1} parent=1 // pred_check_branch
      %32 = sbr.rel (0) target = $region13
    $region12: #{gcn_block_forward.1} parent=1 // pred_region
      _
    $region13: #{gcn_block_forward.1} parent=1 // pred_fallthru
      _
    // Predicated region
    $region14: #{gcn_block_forward.1} parent=1 // pred_check
      _
    $region15: #{gcn_block_forward.1} parent=1 // pred_check_branch
      %34 = sbr.rel (0) target = $region17
    $region16: #{gcn_block_forward.1} parent=1 // pred_region
      _
    $region17: #{gcn_block_forward.1} parent=1 // pred_fallthru
      _
    // Predicated region
    $region18: #{gcn_block_forward.1} parent=1 // pred_check
      _
    $region19: #{gcn_block_forward.1} parent=1 // pred_check_branch
      %36 = sbr.rel (0) target = $region21
    $region20: #{gcn_block_forward.1} parent=1 // pred_region
      _
    $region21: #{gcn_block_forward.1} parent=1 // pred_fallthru
      _
    // Predicated region
    $region22: #{gcn_block_forward.1} parent=1 // pred_check
      _
    $region23: #{gcn_block_forward.1} parent=1 // pred_check_branch
      %38 = sbr.rel (0) target = $region25
    $region24: #{gcn_block_forward.1} parent=1 // pred_region
      _
    $region25: #{gcn_block_forward.1} parent=1 // pred_fallthru
      _
    // Predicated region
    $region26: #{gcn_block_forward.1} parent=1 // pred_check
      _
    $region27: #{gcn_block_forward.1} parent=1 // pred_check_branch
      %40 = sbr.rel (0) target = $region29
    $region28: #{gcn_block_forward.1} parent=1 // pred_region
      _
    $region29: #{gcn_block_forward.1} parent=1 // pred_fallthru
      _
    // Predicated region
    $region30: #{gcn_block_forward.1} parent=1 // pred_check
      _
    $region31: #{gcn_block_forward.1} parent=1 // pred_check_branch
      %42 = sbr.rel (0) target = $region33
    $region32: #{gcn_block_forward.1} parent=1 // pred_region
      _
    $region33: #{gcn_block_forward.1} parent=1 // pred_fallthru
      _
    // Predicated region
    $region34: #{gcn_block_forward.1} parent=1 // pred_check
      _
    $region35: #{gcn_block_forward.1} parent=1 // pred_check_branch
      %44 = sbr.rel (0) target = $region37
    $region36: #{gcn_block_forward.1} parent=1 // pred_region
      _
    $region37: #{gcn_block_forward.1} parent=1 // pred_fallthru
      _
    // Predicated region
    $region38: #{gcn_block_forward.1} parent=1 // pred_check
      _
    $region39: #{gcn_block_forward.1} parent=1 // pred_check_branch
      %46 = sbr.rel (0) target = $region41
    $region40: #{gcn_block_forward.1} parent=1 // pred_region
      _
    $region41: #{gcn_block_forward.1} parent=1 // pred_fallthru
      _
    // Predicated region
    $region42: #{gcn_block_forward.1} parent=1 // pred_check
      _
    $region43: #{gcn_block_forward.1} parent=1 // pred_check_branch
      %48 = sbr.rel (0) target = $region45
    $region44: #{gcn_block_forward.1} parent=1 // pred_region
      _
    $region45: #{gcn_block_forward.1} parent=1 // pred_fallthru
      _
    // Predicated region
    $region46: #{gcn_block_forward.1} parent=1 // pred_check
      _
    $region47: #{gcn_block_forward.1} parent=1 // pred_check_branch
      %50 = sbr.rel (0) target = $region49
    $region48: #{gcn_block_forward.1} parent=1 // pred_region
      _
    $region49: #{gcn_block_forward.1} parent=1 // pred_fallthru
      _
    // Predicated region
    $region50: #{gcn_block_forward.1} parent=1 // pred_check
      _
    $region51: #{gcn_block_forward.1} parent=1 // pred_check_branch
      %52 = sbr.rel (0) target = $region53
    $region52: #{gcn_block_forward.1} parent=1 // pred_region
      _
    $region53: #{gcn_block_forward.1} parent=1 // pred_fallthru
      _
    // Predicated region
    $region54: #{gcn_block_forward.1} parent=1 // pred_check
      _
    $region55: #{gcn_block_forward.1} parent=1 // pred_check_branch
      %54 = sbr.rel (0) target = $region57
    $region56: #{gcn_block_forward.1} parent=1 // pred_region
      _
    $region57: #{gcn_block_forward.1} parent=1 // pred_fallthru
      _
    // Predicated region
    $region58: #{gcn_block_forward.1} parent=1 // pred_check
      _
    $region59: #{gcn_block_forward.1} parent=1 // pred_check_branch
      %56 = sbr.rel (0) target = $region61
    $region60: #{gcn_block_forward.1} parent=1 // pred_region
      _
    $region61: #{gcn_block_forward.1} parent=1 // pred_fallthru
      _
    // Predicated region
    $region62: #{gcn_block_forward.1} parent=1 // pred_check
      _
    $region63: #{gcn_block_forward.1} parent=1 // pred_check_branch
      %58 = sbr.rel (0) target = $region65
    $region64: #{gcn_block_forward.1} parent=1 // pred_region
      _
    $region65: #{gcn_block_forward.1} parent=1 // pred_fallthru
      _
    // Predicated region
    $region66: #{gcn_block_forward.1} parent=1 // pred_check
      _
    $region67: #{gcn_block_forward.1} parent=1 // pred_check_branch
      %60 = sbr.rel (0) target = $region69
    $region68: #{gcn_block_forward.1} parent=1 // pred_region
      _
    $region69: #{gcn_block_forward.1} parent=1 // pred_fallthru
      _
    %v61 = vlaneseq
    %v62 = vshrl.u32 %v61, 7
    %v63 = vld [vmem:[%s0] sm:$0x1]
    %v64 = vlaneseq
    %v65 = vshrl.u32 %v64, 7
    %v66 = vsub.s32 0, %v65
    %v67 = vrot.slane %v63, %v66
    %vm68 = vcmp.eq.s32.totalorder %v62, %v67
    %v69 = vsel %vm68, 1, 0
    %v70 = vcvt.s32.f32 %v69
    %v71 = vadd.s32 %v62, 8
    %v72 = vld [vmem:[%s1] sm:$0x1]
    %v73 = vlaneseq
    %v74 = vshrl.u32 %v73, 7
    %v75 = vsub.s32 0, %v74
    %v76 = vrot.slane %v72, %v75
    %vm77 = vcmp.eq.s32.totalorder %v62, %v76
    %vm78 = vcmp.eq.s32.totalorder %v71, %v76
    %v79 = vsel %vm77, 1, 0
    %v80 = vsel %vm78, 1, 0
    %v81 = vcvt.s32.f32 %v79
    %v82 = vcvt.s32.f32 %v80
    %v83 = vlaneseq
    %v84 = vand.u32 %v83, 127
    %v85 = vld [vmem:[%s2] sm:$0xff]
    %v86 = vld [vmem:[%s2 + $0x8] sm:$0xff]
    %v87 = vld [vmem:[%s2 + $0x10] sm:$0xff]
    %v88 = vld [vmem:[%s2 + $0x18] sm:$0xff]
    %v89 = vld [vmem:[%s2 + $0x20] sm:$0xff]
    %v90 = vld [vmem:[%s2 + $0x28] sm:$0xff]
    %v91 = vld [vmem:[%s2 + $0x30] sm:$0xff]
    %v92 = vld [vmem:[%s2 + $0x38] sm:$0xff]
    %93 = vset.pattern.permute.xlu0 0
    %94 = vperm.xlu0 %93, %v85
    %v95 = vpop.permute.xlu0 %94
    %96 = vset.pattern.permute.xlu0 0
    %97 = vperm.xlu0 %96, %v86
    %v98 = vpop.permute.xlu0 %97
    %99 = vset.pattern.permute.xlu0 0
    %100 = vperm.xlu0 %99, %v87
    %v101 = vpop.permute.xlu0 %100
    %102 = vset.pattern.permute.xlu0 0
    %103 = vperm.xlu0 %102, %v88
    %v104 = vpop.permute.xlu0 %103
    %105 = vset.pattern.permute.xlu0 0
    %106 = vperm.xlu0 %105, %v89
    %v107 = vpop.permute.xlu0 %106
    %108 = vset.pattern.permute.xlu0 0
    %109 = vperm.xlu0 %108, %v90
    %v110 = vpop.permute.xlu0 %109
    %111 = vset.pattern.permute.xlu0 0
    %112 = vperm.xlu0 %111, %v91
    %v113 = vpop.permute.xlu0 %112
    %114 = vset.pattern.permute.xlu0 0
    %115 = vperm.xlu0 %114, %v92
    %v116 = vpop.permute.xlu0 %115
    %vm117 = vcmp.eq.s32.totalorder %v84, %v95
    %vm118 = vcmp.eq.s32.totalorder %v84, %v98
    %vm119 = vcmp.eq.s32.totalorder %v84, %v101
    %vm120 = vcmp.eq.s32.totalorder %v84, %v104
    %vm121 = vcmp.eq.s32.totalorder %v84, %v107
    %vm122 = vcmp.eq.s32.totalorder %v84, %v110
    %vm123 = vcmp.eq.s32.totalorder %v84, %v113
    %vm124 = vcmp.eq.s32.totalorder %v84, %v116
    %v125 = vsel %vm117, 1, 0
    %v126 = vsel %vm118, 1, 0
    %v127 = vsel %vm119, 1, 0
    %v128 = vsel %vm120, 1, 0
    %v129 = vsel %vm121, 1, 0
    %v130 = vsel %vm122, 1, 0
    %v131 = vsel %vm123, 1, 0
    %v132 = vsel %vm124, 1, 0
    %v133 = vcvt.s32.f32 %v125
    %v134 = vcvt.s32.f32 %v126
    %v135 = vcvt.s32.f32 %v127
    %v136 = vcvt.s32.f32 %v128
    %v137 = vcvt.s32.f32 %v129
    %v138 = vcvt.s32.f32 %v130
    %v139 = vcvt.s32.f32 %v131
    %v140 = vcvt.s32.f32 %v132
    %v141 = vld [vmem:[%s3] sm:$0xff]
    %v142 = vld [vmem:[%s3 + $0x8] sm:$0xff]
    %v143 = vld [vmem:[%s3 + $0x10] sm:$0xff]
    %v144 = vld [vmem:[%s3 + $0x18] sm:$0xff]
    %v145 = vld [vmem:[%s3 + $0x20] sm:$0xff]
    %v146 = vld [vmem:[%s3 + $0x28] sm:$0xff]
    %v147 = vld [vmem:[%s3 + $0x30] sm:$0xff]
    %v148 = vld [vmem:[%s3 + $0x38] sm:$0xff]
    %149 = vset.pattern.permute.xlu0 0
    %150 = vperm.xlu0 %149, %v141
    %v151 = vpop.permute.xlu0 %150
    %152 = vset.pattern.permute.xlu0 0
    %153 = vperm.xlu0 %152, %v142
    %v154 = vpop.permute.xlu0 %153
    %155 = vset.pattern.permute.xlu0 0
    %156 = vperm.xlu0 %155, %v143
    %v157 = vpop.permute.xlu0 %156
    %158 = vset.pattern.permute.xlu0 0
    %159 = vperm.xlu0 %158, %v144
    %v160 = vpop.permute.xlu0 %159
    %161 = vset.pattern.permute.xlu0 0
    %162 = vperm.xlu0 %161, %v145
    %v163 = vpop.permute.xlu0 %162
    %164 = vset.pattern.permute.xlu0 0
    %165 = vperm.xlu0 %164, %v146
    %v166 = vpop.permute.xlu0 %165
    %167 = vset.pattern.permute.xlu0 0
    %168 = vperm.xlu0 %167, %v147
    %v169 = vpop.permute.xlu0 %168
    %170 = vset.pattern.permute.xlu0 0
    %171 = vperm.xlu0 %170, %v148
    %v172 = vpop.permute.xlu0 %171
    %vm173 = vcmp.eq.s32.totalorder %v84, %v151
    %vm174 = vcmp.eq.s32.totalorder %v84, %v154
    %vm175 = vcmp.eq.s32.totalorder %v84, %v157
    %vm176 = vcmp.eq.s32.totalorder %v84, %v160
    %vm177 = vcmp.eq.s32.totalorder %v84, %v163
    %vm178 = vcmp.eq.s32.totalorder %v84, %v166
    %vm179 = vcmp.eq.s32.totalorder %v84, %v169
    %vm180 = vcmp.eq.s32.totalorder %v84, %v172
    %v181 = vsel %vm173, 1, 0
    %v182 = vsel %vm174, 1, 0
    %v183 = vsel %vm175, 1, 0
    %v184 = vsel %vm176, 1, 0
    %v185 = vsel %vm177, 1, 0
    %v186 = vsel %vm178, 1, 0
    %v187 = vsel %vm179, 1, 0
    %v188 = vsel %vm180, 1, 0
    %v189 = vcvt.s32.f32 %v181
    %v190 = vcvt.s32.f32 %v182
    %v191 = vcvt.s32.f32 %v183
    %v192 = vcvt.s32.f32 %v184
    %v193 = vcvt.s32.f32 %v185
    %v194 = vcvt.s32.f32 %v186
    %v195 = vcvt.s32.f32 %v187
    %v196 = vcvt.s32.f32 %v188
    %v197 = vld [vmem:[%s6] sm:$0xff]
    %v198 = vld [vmem:[%s6 + $0x8] sm:$0xff]
    %v199 = vld [vmem:[%s6 + $0x10] sm:$0xff]
    %v200 = vld [vmem:[%s6 + $0x18] sm:$0xff]
    %v201 = vld [vmem:[%s6 + $0x20] sm:$0xff]
    %v202 = vld [vmem:[%s6 + $0x28] sm:$0xff]
    %v203 = vld [vmem:[%s6 + $0x30] sm:$0xff]
    %v204 = vld [vmem:[%s6 + $0x38] sm:$0xff]
    %v205 = vld [vmem:[%s4] sm:$0xff]
    %v206 = vld [vmem:[%s5] sm:$0xff]
    %v207 = vld [vmem:[%s5 + $0x8] sm:$0xff]
    %v208 = vld [vmem:[%s8] sm:$0xff]
    %v209 = vld [vmem:[%s8 + $0x8] sm:$0xff]
    %v210 = vld [vmem:[%s9] sm:$0x1]
    %v212 = vlaneseq
    %v213 = vshrl.u32 %v212, 7
    %v214 = vsub.s32 0, %v213
    %v215 = vrot.slane %v210, %v214
    %vm217 = vcmask 130048
    %v219 = vsel %vm217, %v197, 0
    %v222 = vsel %vm217, %v198, 0
    %v225 = vsel %vm217, %v199, 0
    %v228 = vsel %vm217, %v200, 0
    %v231 = vsel %vm217, %v201, 0
    %v234 = vsel %vm217, %v202, 0
    %v237 = vsel %vm217, %v203, 0
    %v240 = vsel %vm217, %v204, 0
    %242 = vmatprep.subr.mxu0 0.0
    %243 = vmatpush1.msra.mxu0 0.0
    %244 = vmatprep.subr.mxu0 0.0
    %245 = vmatpush1.msra.mxu0 0.0
    %246 = vmatprep.subr.mxu0 0.0
    %247 = vmatpush1.msra.mxu0 0.0
    %248 = vmatprep.subr.mxu0 0.0
    %249 = vmatpush1.msra.mxu0 0.0
    %250 = vmatprep.subr.mxu0 0.0
    %251 = vmatpush1.msra.mxu0 0.0
    %252 = vmatprep.subr.mxu0 0.0
    %253 = vmatpush1.msra.mxu0 0.0
    %254 = vmatprep.subr.mxu0 0.0
    %255 = vmatpush1.msra.mxu0 0.0
    %256 = vmatprep.subr.mxu0 0.0
    %257 = vmatpush1.msra.mxu0 0.0
    %258 = vmatprep.subr.mxu0 0.0
    %259 = vmatpush1.msra.mxu0 0.0
    %260 = vmatprep.subr.mxu0 0.0
    %261 = vmatpush1.msra.mxu0 0.0
    %262 = vmatprep.subr.mxu0 0.0
    %263 = vmatpush1.msra.mxu0 0.0
    %264 = vmatprep.subr.mxu0 0.0
    %265 = vmatpush1.msra.mxu0 0.0
    %266 = vmatprep.subr.mxu0 0.0
    %267 = vmatpush1.msra.mxu0 0.0
    %268 = vmatprep.subr.mxu0 0.0
    %269 = vmatpush1.msra.mxu0 0.0
    %270 = vmatprep.subr.mxu0 0.0
    %271 = vmatpush1.msra.mxu0 %v209
    %272 = vmatprep.subr.mxu0 0.0
    %273 = vmatpush1.msra.mxu0 %v208
    %274 = vmatprep.subr.mxu0 0.0
    %275 = vmatpush2.msra.mxu0 0.0
    %276 = vmatprep.subr.mxu0 0.0
    %277 = vmatpush2.msra.mxu0 0.0
    %278 = vmatprep.subr.mxu0 0.0
    %279 = vmatpush2.msra.mxu0 0.0
    %280 = vmatprep.subr.mxu0 0.0
    %281 = vmatpush2.msra.mxu0 0.0
    %282 = vmatprep.subr.mxu0 0.0
    %283 = vmatpush2.msra.mxu0 0.0
    %284 = vmatprep.subr.mxu0 0.0
    %285 = vmatpush2.msra.mxu0 0.0
    %286 = vmatprep.subr.mxu0 0.0
    %287 = vmatpush2.msra.mxu0 0.0
    %288 = vmatprep.subr.mxu0 0.0
    %289 = vmatpush2.msra.mxu0 0.0
    %290 = vmatprep.subr.mxu0 0.0
    %291 = vmatpush2.msra.mxu0 0.0
    %292 = vmatprep.subr.mxu0 0.0
    %293 = vmatpush2.msra.mxu0 0.0
    %294 = vmatprep.subr.mxu0 0.0
    %295 = vmatpush2.msra.mxu0 0.0
    %296 = vmatprep.subr.mxu0 0.0
    %297 = vmatpush2.msra.mxu0 0.0
    %298 = vmatprep.subr.mxu0 0.0
    %299 = vmatpush2.msra.mxu0 0.0
    %300 = vmatprep.subr.mxu0 0.0
    %301 = vmatpush2.msra.mxu0 0.0
    %302 = vmatprep.subr.mxu0 0.0
    %303 = vmatpush2.msra.mxu0 0.0
    %304 = vmatprep.subr.mxu0 0.0
    %305 = vmatpush2.msra.mxu0 0.0
    %306 = vmatprep.mubr.f32.mxu0 0.0
    %307 = vmatmul.mubr.f32.gmra.mxu0 %v219
    %v308 = vpop.f32.mrf.mxu0
    %v309 = vadd.f32 %v215, %v308
    %v310 = vpop.f32.mrf.mxu0
    %311 = vmatprep.mubr.f32.mxu0 0.0
    %312 = vmatmul.mubr.f32.gmra.mxu0 %v222
    %v313 = vpop.f32.mrf.mxu0
    %v314 = vadd.f32 %v215, %v313
    %v315 = vpop.f32.mrf.mxu0
    %316 = vmatprep.mubr.f32.mxu0 0.0
    %317 = vmatmul.mubr.f32.gmra.mxu0 %v225
    %v318 = vpop.f32.mrf.mxu0
    %v319 = vadd.f32 %v215, %v318
    %v320 = vpop.f32.mrf.mxu0
    %321 = vmatprep.mubr.f32.mxu0 0.0
    %322 = vmatmul.mubr.f32.gmra.mxu0 %v228
    %v323 = vpop.f32.mrf.mxu0
    %v324 = vadd.f32 %v215, %v323
    %v325 = vpop.f32.mrf.mxu0
    %326 = vmatprep.mubr.f32.mxu0 0.0
    %327 = vmatmul.mubr.f32.gmra.mxu0 %v231
    %v328 = vpop.f32.mrf.mxu0
    %v329 = vadd.f32 %v215, %v328
    %v330 = vpop.f32.mrf.mxu0
    %331 = vmatprep.mubr.f32.mxu0 0.0
    %332 = vmatmul.mubr.f32.gmra.mxu0 %v234
    %v333 = vpop.f32.mrf.mxu0
    %v334 = vadd.f32 %v215, %v333
    %v335 = vpop.f32.mrf.mxu0
    %336 = vmatprep.mubr.f32.mxu0 0.0
    %337 = vmatmul.mubr.f32.gmra.mxu0 %v237
    %v338 = vpop.f32.mrf.mxu0
    %v339 = vadd.f32 %v215, %v338
    %v340 = vpop.f32.mrf.mxu0
    %341 = vmatprep.mubr.f32.mxu0 0.0
    %342 = vmatmul.mubr.f32.gmra.mxu0 %v240
    %v343 = vpop.f32.mrf.mxu0
    %v344 = vadd.f32 %v215, %v343
    %v345 = vpop.f32.mrf.mxu0
    %346 = vdwg.mxu0
    %v347 = vld [vmem:[%s7] sm:$0xff]
    %v348 = vld [vmem:[%s7 + $0x8] sm:$0xff]
    %v349 = vld [vmem:[%s7 + $0x10] sm:$0xff]
    %v350 = vld [vmem:[%s7 + $0x18] sm:$0xff]
    %vm351 = vcmask 261120
    %v353 = vsel %vm351, %v206, 0
    %v356 = vsel %vm351, %v207, 0
    %358 = vmatprep.subr.mxu0 0.0
    %359 = vmatpush1.msra.mxu0 0.0
    %360 = vmatprep.subr.mxu0 0.0
    %361 = vmatpush1.msra.mxu0 0.0
    %362 = vmatprep.subr.mxu0 0.0
    %363 = vmatpush1.msra.mxu0 0.0
    %364 = vmatprep.subr.mxu0 0.0
    %365 = vmatpush1.msra.mxu0 0.0
    %366 = vmatprep.subr.mxu0 0.0
    %367 = vmatpush1.msra.mxu0 0.0
    %368 = vmatprep.subr.mxu0 0.0
    %369 = vmatpush1.msra.mxu0 0.0
    %370 = vmatprep.subr.mxu0 0.0
    %371 = vmatpush1.msra.mxu0 0.0
    %372 = vmatprep.subr.mxu0 0.0
    %373 = vmatpush1.msra.mxu0 0.0
    %374 = vmatprep.subr.mxu0 0.0
    %375 = vmatpush1.msra.mxu0 0.0
    %376 = vmatprep.subr.mxu0 0.0
    %377 = vmatpush1.msra.mxu0 0.0
    %378 = vmatprep.subr.mxu0 0.0
    %379 = vmatpush1.msra.mxu0 0.0
    %380 = vmatprep.subr.mxu0 0.0
    %381 = vmatpush1.msra.mxu0 0.0
    %382 = vmatprep.subr.mxu0 0.0
    %383 = vmatpush1.msra.mxu0 %v350
    %384 = vmatprep.subr.mxu0 0.0
    %385 = vmatpush1.msra.mxu0 %v349
    %386 = vmatprep.subr.mxu0 0.0
    %387 = vmatpush1.msra.mxu0 %v348
    %388 = vmatprep.subr.mxu0 0.0
    %389 = vmatpush1.msra.mxu0 %v347
    %390 = vmatprep.subr.mxu0 0.0
    %391 = vmatpush2.msra.mxu0 0.0
    %392 = vmatprep.subr.mxu0 0.0
    %393 = vmatpush2.msra.mxu0 0.0
    %394 = vmatprep.subr.mxu0 0.0
    %395 = vmatpush2.msra.mxu0 0.0
    %396 = vmatprep.subr.mxu0 0.0
    %397 = vmatpush2.msra.mxu0 0.0
    %398 = vmatprep.subr.mxu0 0.0
    %399 = vmatpush2.msra.mxu0 0.0
    %400 = vmatprep.subr.mxu0 0.0
    %401 = vmatpush2.msra.mxu0 0.0
    %402 = vmatprep.subr.mxu0 0.0
    %403 = vmatpush2.msra.mxu0 0.0
    %404 = vmatprep.subr.mxu0 0.0
    %405 = vmatpush2.msra.mxu0 0.0
    %406 = vmatprep.subr.mxu0 0.0
    %407 = vmatpush2.msra.mxu0 0.0
    %408 = vmatprep.subr.mxu0 0.0
    %409 = vmatpush2.msra.mxu0 0.0
    %410 = vmatprep.subr.mxu0 0.0
    %411 = vmatpush2.msra.mxu0 0.0
    %412 = vmatprep.subr.mxu0 0.0
    %413 = vmatpush2.msra.mxu0 0.0
    %414 = vmatprep.subr.mxu0 0.0
    %415 = vmatpush2.msra.mxu0 0.0
    %416 = vmatprep.subr.mxu0 0.0
    %417 = vmatpush2.msra.mxu0 0.0
    %418 = vmatprep.subr.mxu0 0.0
    %419 = vmatpush2.msra.mxu0 0.0
    %420 = vmatprep.subr.mxu0 0.0
    %421 = vmatpush2.msra.mxu0 0.0
    %422 = vmatprep.mubr.f32.mxu0 0.0
    %423 = vmatmul.mubr.f32.gmra.mxu0 %v353
    %v424 = vpop.f32.mrf.mxu0
    %v425 = vadd.f32 0.0, %v424
    %v426 = vpop.f32.mrf.mxu0
    %427 = vmatprep.mubr.f32.mxu0 0.0
    %428 = vmatmul.mubr.f32.gmra.mxu0 %v356
    %v429 = vpop.f32.mrf.mxu0
    %v430 = vadd.f32 0.0, %v429
    %v431 = vpop.f32.mrf.mxu0
    %432 = vdwg.mxu0
    %v434 = vsel %vm217, %v189, 0
    %v437 = vsel %vm217, %v190, 0
    %v440 = vsel %vm217, %v191, 0
    %v443 = vsel %vm217, %v192, 0
    %v446 = vsel %vm217, %v193, 0
    %v449 = vsel %vm217, %v194, 0
    %v452 = vsel %vm217, %v195, 0
    %v455 = vsel %vm217, %v196, 0
    %457 = vmatprep.subr.mxu0 0.0
    %458 = vmatpush1.msra.mxu0 0.0
    %459 = vmatprep.subr.mxu0 0.0
    %460 = vmatpush1.msra.mxu0 0.0
    %461 = vmatprep.subr.mxu0 0.0
    %462 = vmatpush1.msra.mxu0 0.0
    %463 = vmatprep.subr.mxu0 0.0
    %464 = vmatpush1.msra.mxu0 0.0
    %465 = vmatprep.subr.mxu0 0.0
    %466 = vmatpush1.msra.mxu0 0.0
    %467 = vmatprep.subr.mxu0 0.0
    %468 = vmatpush1.msra.mxu0 0.0
    %469 = vmatprep.subr.mxu0 0.0
    %470 = vmatpush1.msra.mxu0 0.0
    %471 = vmatprep.subr.mxu0 0.0
    %472 = vmatpush1.msra.mxu0 0.0
    %473 = vmatprep.subr.mxu0 0.0
    %474 = vmatpush1.msra.mxu0 0.0
    %475 = vmatprep.subr.mxu0 0.0
    %476 = vmatpush1.msra.mxu0 0.0
    %477 = vmatprep.subr.mxu0 0.0
    %478 = vmatpush1.msra.mxu0 0.0
    %479 = vmatprep.subr.mxu0 0.0
    %480 = vmatpush1.msra.mxu0 0.0
    %481 = vmatprep.subr.mxu0 0.0
    %482 = vmatpush1.msra.mxu0 0.0
    %483 = vmatprep.subr.mxu0 0.0
    %484 = vmatpush1.msra.mxu0 0.0
    %485 = vmatprep.subr.mxu0 0.0
    %486 = vmatpush1.msra.mxu0 %v430
    %487 = vmatprep.subr.mxu0 0.0
    %488 = vmatpush1.msra.mxu0 %v425
    %489 = vmatprep.subr.mxu0 0.0
    %490 = vmatpush2.msra.mxu0 0.0
    %491 = vmatprep.subr.mxu0 0.0
    %492 = vmatpush2.msra.mxu0 0.0
    %493 = vmatprep.subr.mxu0 0.0
    %494 = vmatpush2.msra.mxu0 0.0
    %495 = vmatprep.subr.mxu0 0.0
    %496 = vmatpush2.msra.mxu0 0.0
    %497 = vmatprep.subr.mxu0 0.0
    %498 = vmatpush2.msra.mxu0 0.0
    %499 = vmatprep.subr.mxu0 0.0
    %500 = vmatpush2.msra.mxu0 0.0
    %501 = vmatprep.subr.mxu0 0.0
    %502 = vmatpush2.msra.mxu0 0.0
    %503 = vmatprep.subr.mxu0 0.0
    %504 = vmatpush2.msra.mxu0 0.0
    %505 = vmatprep.subr.mxu0 0.0
    %506 = vmatpush2.msra.mxu0 0.0
    %507 = vmatprep.subr.mxu0 0.0
    %508 = vmatpush2.msra.mxu0 0.0
    %509 = vmatprep.subr.mxu0 0.0
    %510 = vmatpush2.msra.mxu0 0.0
    %511 = vmatprep.subr.mxu0 0.0
    %512 = vmatpush2.msra.mxu0 0.0
    %513 = vmatprep.subr.mxu0 0.0
    %514 = vmatpush2.msra.mxu0 0.0
    %515 = vmatprep.subr.mxu0 0.0
    %516 = vmatpush2.msra.mxu0 0.0
    %517 = vmatprep.subr.mxu0 0.0
    %518 = vmatpush2.msra.mxu0 0.0
    %519 = vmatprep.subr.mxu0 0.0
    %520 = vmatpush2.msra.mxu0 0.0
    %521 = vmatprep.mubr.f32.mxu0 0.0
    %522 = vmatmul.mubr.f32.gmra.mxu0 %v434
    %v523 = vpop.f32.mrf.mxu0
    %v524 = vadd.f32 %v309, %v523
    %v525 = vpop.f32.mrf.mxu0
    %526 = vmatprep.mubr.f32.mxu0 0.0
    %527 = vmatmul.mubr.f32.gmra.mxu0 %v437
    %v528 = vpop.f32.mrf.mxu0
    %v529 = vadd.f32 %v314, %v528
    %v530 = vpop.f32.mrf.mxu0
    %531 = vmatprep.mubr.f32.mxu0 0.0
    %532 = vmatmul.mubr.f32.gmra.mxu0 %v440
    %v533 = vpop.f32.mrf.mxu0
    %v534 = vadd.f32 %v319, %v533
    %v535 = vpop.f32.mrf.mxu0
    %536 = vmatprep.mubr.f32.mxu0 0.0
    %537 = vmatmul.mubr.f32.gmra.mxu0 %v443
    %v538 = vpop.f32.mrf.mxu0
    %v539 = vadd.f32 %v324, %v538
    %v540 = vpop.f32.mrf.mxu0
    %541 = vmatprep.mubr.f32.mxu0 0.0
    %542 = vmatmul.mubr.f32.gmra.mxu0 %v446
    %v543 = vpop.f32.mrf.mxu0
    %v544 = vadd.f32 %v329, %v543
    %v545 = vpop.f32.mrf.mxu0
    %546 = vmatprep.mubr.f32.mxu0 0.0
    %547 = vmatmul.mubr.f32.gmra.mxu0 %v449
    %v548 = vpop.f32.mrf.mxu0
    %v549 = vadd.f32 %v334, %v548
    %v550 = vpop.f32.mrf.mxu0
    %551 = vmatprep.mubr.f32.mxu0 0.0
    %552 = vmatmul.mubr.f32.gmra.mxu0 %v452
    %v553 = vpop.f32.mrf.mxu0
    %v554 = vadd.f32 %v339, %v553
    %v555 = vpop.f32.mrf.mxu0
    %556 = vmatprep.mubr.f32.mxu0 0.0
    %557 = vmatmul.mubr.f32.gmra.mxu0 %v455
    %v558 = vpop.f32.mrf.mxu0
    %v559 = vadd.f32 %v344, %v558
    %v560 = vpop.f32.mrf.mxu0
    %561 = vdwg.mxu0
    %v562 = vmax.f32 %v524, 0.0
    %v563 = vmax.f32 %v529, 0.0
    %v564 = vmax.f32 %v534, 0.0
    %v565 = vmax.f32 %v539, 0.0
    %v566 = vmax.f32 %v544, 0.0
    %v567 = vmax.f32 %v549, 0.0
    %v568 = vmax.f32 %v554, 0.0
    %v569 = vmax.f32 %v559, 0.0
    %v571 = vsel %vm351, %v205, 0
    %573 = vmatprep.subr.mxu0 0.0
    %574 = vmatpush1.msra.mxu0 0.0
    %575 = vmatprep.subr.mxu0 0.0
    %576 = vmatpush1.msra.mxu0 0.0
    %577 = vmatprep.subr.mxu0 0.0
    %578 = vmatpush1.msra.mxu0 0.0
    %579 = vmatprep.subr.mxu0 0.0
    %580 = vmatpush1.msra.mxu0 0.0
    %581 = vmatprep.subr.mxu0 0.0
    %582 = vmatpush1.msra.mxu0 0.0
    %583 = vmatprep.subr.mxu0 0.0
    %584 = vmatpush1.msra.mxu0 0.0
    %585 = vmatprep.subr.mxu0 0.0
    %586 = vmatpush1.msra.mxu0 0.0
    %587 = vmatprep.subr.mxu0 0.0
    %588 = vmatpush1.msra.mxu0 0.0
    %589 = vmatprep.subr.mxu0 0.0
    %590 = vmatpush1.msra.mxu0 0.0
    %591 = vmatprep.subr.mxu0 0.0
    %592 = vmatpush1.msra.mxu0 0.0
    %593 = vmatprep.subr.mxu0 0.0
    %594 = vmatpush1.msra.mxu0 0.0
    %595 = vmatprep.subr.mxu0 0.0
    %596 = vmatpush1.msra.mxu0 0.0
    %597 = vmatprep.subr.mxu0 0.0
    %598 = vmatpush1.msra.mxu0 %v350
    %599 = vmatprep.subr.mxu0 0.0
    %600 = vmatpush1.msra.mxu0 %v349
    %601 = vmatprep.subr.mxu0 0.0
    %602 = vmatpush1.msra.mxu0 %v348
    %603 = vmatprep.subr.mxu0 0.0
    %604 = vmatpush1.msra.mxu0 %v347
    %605 = vmatprep.subr.mxu0 0.0
    %606 = vmatpush2.msra.mxu0 0.0
    %607 = vmatprep.subr.mxu0 0.0
    %608 = vmatpush2.msra.mxu0 0.0
    %609 = vmatprep.subr.mxu0 0.0
    %610 = vmatpush2.msra.mxu0 0.0
    %611 = vmatprep.subr.mxu0 0.0
    %612 = vmatpush2.msra.mxu0 0.0
    %613 = vmatprep.subr.mxu0 0.0
    %614 = vmatpush2.msra.mxu0 0.0
    %615 = vmatprep.subr.mxu0 0.0
    %616 = vmatpush2.msra.mxu0 0.0
    %617 = vmatprep.subr.mxu0 0.0
    %618 = vmatpush2.msra.mxu0 0.0
    %619 = vmatprep.subr.mxu0 0.0
    %620 = vmatpush2.msra.mxu0 0.0
    %621 = vmatprep.subr.mxu0 0.0
    %622 = vmatpush2.msra.mxu0 0.0
    %623 = vmatprep.subr.mxu0 0.0
    %624 = vmatpush2.msra.mxu0 0.0
    %625 = vmatprep.subr.mxu0 0.0
    %626 = vmatpush2.msra.mxu0 0.0
    %627 = vmatprep.subr.mxu0 0.0
    %628 = vmatpush2.msra.mxu0 0.0
    %629 = vmatprep.subr.mxu0 0.0
    %630 = vmatpush2.msra.mxu0 0.0
    %631 = vmatprep.subr.mxu0 0.0
    %632 = vmatpush2.msra.mxu0 0.0
    %633 = vmatprep.subr.mxu0 0.0
    %634 = vmatpush2.msra.mxu0 0.0
    %635 = vmatprep.subr.mxu0 0.0
    %636 = vmatpush2.msra.mxu0 0.0
    %637 = vmatprep.mubr.f32.mxu0 0.0
    %638 = vmatmul.mubr.f32.gmra.mxu0 %v571
    %v639 = vpop.f32.mrf.mxu0
    %v640 = vadd.f32 0.0, %v639
    %v641 = vpop.f32.mrf.mxu0
    %642 = vdwg.mxu0
    %vm643 = vcmask 64512
    %v645 = vsel %vm643, %v133, 0
    %v648 = vsel %vm643, %v134, 0
    %v651 = vsel %vm643, %v135, 0
    %v654 = vsel %vm643, %v136, 0
    %v657 = vsel %vm643, %v137, 0
    %v660 = vsel %vm643, %v138, 0
    %v663 = vsel %vm643, %v139, 0
    %v666 = vsel %vm643, %v140, 0
    %668 = vmatprep.subr.mxu0 0.0
    %669 = vmatpush1.msra.mxu0 0.0
    %670 = vmatprep.subr.mxu0 0.0
    %671 = vmatpush1.msra.mxu0 0.0
    %672 = vmatprep.subr.mxu0 0.0
    %673 = vmatpush1.msra.mxu0 0.0
    %674 = vmatprep.subr.mxu0 0.0
    %675 = vmatpush1.msra.mxu0 0.0
    %676 = vmatprep.subr.mxu0 0.0
    %677 = vmatpush1.msra.mxu0 0.0
    %678 = vmatprep.subr.mxu0 0.0
    %679 = vmatpush1.msra.mxu0 0.0
    %680 = vmatprep.subr.mxu0 0.0
    %681 = vmatpush1.msra.mxu0 0.0
    %682 = vmatprep.subr.mxu0 0.0
    %683 = vmatpush1.msra.mxu0 0.0
    %684 = vmatprep.subr.mxu0 0.0
    %685 = vmatpush1.msra.mxu0 0.0
    %686 = vmatprep.subr.mxu0 0.0
    %687 = vmatpush1.msra.mxu0 0.0
    %688 = vmatprep.subr.mxu0 0.0
    %689 = vmatpush1.msra.mxu0 0.0
    %690 = vmatprep.subr.mxu0 0.0
    %691 = vmatpush1.msra.mxu0 0.0
    %692 = vmatprep.subr.mxu0 0.0
    %693 = vmatpush1.msra.mxu0 0.0
    %694 = vmatprep.subr.mxu0 0.0
    %695 = vmatpush1.msra.mxu0 0.0
    %696 = vmatprep.subr.mxu0 0.0
    %697 = vmatpush1.msra.mxu0 0.0
    %698 = vmatprep.subr.mxu0 0.0
    %699 = vmatpush1.msra.mxu0 %v640
    %700 = vmatprep.subr.mxu0 0.0
    %701 = vmatpush2.msra.mxu0 0.0
    %702 = vmatprep.subr.mxu0 0.0
    %703 = vmatpush2.msra.mxu0 0.0
    %704 = vmatprep.subr.mxu0 0.0
    %705 = vmatpush2.msra.mxu0 0.0
    %706 = vmatprep.subr.mxu0 0.0
    %707 = vmatpush2.msra.mxu0 0.0
    %708 = vmatprep.subr.mxu0 0.0
    %709 = vmatpush2.msra.mxu0 0.0
    %710 = vmatprep.subr.mxu0 0.0
    %711 = vmatpush2.msra.mxu0 0.0
    %712 = vmatprep.subr.mxu0 0.0
    %713 = vmatpush2.msra.mxu0 0.0
    %714 = vmatprep.subr.mxu0 0.0
    %715 = vmatpush2.msra.mxu0 0.0
    %716 = vmatprep.subr.mxu0 0.0
    %717 = vmatpush2.msra.mxu0 0.0
    %718 = vmatprep.subr.mxu0 0.0
    %719 = vmatpush2.msra.mxu0 0.0
    %720 = vmatprep.subr.mxu0 0.0
    %721 = vmatpush2.msra.mxu0 0.0
    %722 = vmatprep.subr.mxu0 0.0
    %723 = vmatpush2.msra.mxu0 0.0
    %724 = vmatprep.subr.mxu0 0.0
    %725 = vmatpush2.msra.mxu0 0.0
    %726 = vmatprep.subr.mxu0 0.0
    %727 = vmatpush2.msra.mxu0 0.0
    %728 = vmatprep.subr.mxu0 0.0
    %729 = vmatpush2.msra.mxu0 0.0
    %730 = vmatprep.subr.mxu0 0.0
    %731 = vmatpush2.msra.mxu0 0.0
    %732 = vmatprep.mubr.f32.mxu0 0.0
    %733 = vmatmul.mubr.f32.gmra.mxu0 %v645
    %v734 = vpop.f32.mrf.mxu0
    %v735 = vadd.f32 %v309, %v734
    %v736 = vpop.f32.mrf.mxu0
    %737 = vmatprep.mubr.f32.mxu0 0.0
    %738 = vmatmul.mubr.f32.gmra.mxu0 %v648
    %v739 = vpop.f32.mrf.mxu0
    %v740 = vadd.f32 %v314, %v739
    %v741 = vpop.f32.mrf.mxu0
    %742 = vmatprep.mubr.f32.mxu0 0.0
    %743 = vmatmul.mubr.f32.gmra.mxu0 %v651
    %v744 = vpop.f32.mrf.mxu0
    %v745 = vadd.f32 %v319, %v744
    %v746 = vpop.f32.mrf.mxu0
    %747 = vmatprep.mubr.f32.mxu0 0.0
    %748 = vmatmul.mubr.f32.gmra.mxu0 %v654
    %v749 = vpop.f32.mrf.mxu0
    %v750 = vadd.f32 %v324, %v749
    %v751 = vpop.f32.mrf.mxu0
    %752 = vmatprep.mubr.f32.mxu0 0.0
    %753 = vmatmul.mubr.f32.gmra.mxu0 %v657
    %v754 = vpop.f32.mrf.mxu0
    %v755 = vadd.f32 %v329, %v754
    %v756 = vpop.f32.mrf.mxu0
    %757 = vmatprep.mubr.f32.mxu0 0.0
    %758 = vmatmul.mubr.f32.gmra.mxu0 %v660
    %v759 = vpop.f32.mrf.mxu0
    %v760 = vadd.f32 %v334, %v759
    %v761 = vpop.f32.mrf.mxu0
    %762 = vmatprep.mubr.f32.mxu0 0.0
    %763 = vmatmul.mubr.f32.gmra.mxu0 %v663
    %v764 = vpop.f32.mrf.mxu0
    %v765 = vadd.f32 %v339, %v764
    %v766 = vpop.f32.mrf.mxu0
    %767 = vmatprep.mubr.f32.mxu0 0.0
    %768 = vmatmul.mubr.f32.gmra.mxu0 %v666
    %v769 = vpop.f32.mrf.mxu0
    %v770 = vadd.f32 %v344, %v769
    %v771 = vpop.f32.mrf.mxu0
    %772 = vdwg.mxu0
    %v773 = vmax.f32 %v735, 0.0
    %v774 = vmax.f32 %v740, 0.0
    %v775 = vmax.f32 %v745, 0.0
    %v776 = vmax.f32 %v750, 0.0
    %v777 = vmax.f32 %v755, 0.0
    %v778 = vmax.f32 %v760, 0.0
    %v779 = vmax.f32 %v765, 0.0
    %v780 = vmax.f32 %v770, 0.0
    %vm781 = vcmask 523264
    %v782 = vsel %vm781, %v70, 0.0
    %783 = vadd.xlane.f32.xlu0 %v782
    %v784 = vpop.xlane.xlu0 %783
    %v785 = vsel %vm781, %v81, 0.0
    %786 = vadd.xlane.f32.xlu0 %v785
    %v787 = vpop.xlane.xlu0 %786
    %v788 = vsel %vm781, %v82, 0.0
    %789 = vadd.xlane.f32.xlu0 %v788
    %v790 = vpop.xlane.xlu0 %789
    %vm791 = vcmp.gt.f32.partialorder %v784, 0.0
    %v793 = vsel %vm781, %v70, 0
    %795 = vmatprep.subr.mxu0 0.0
    %796 = vmatpush1.msra.mxu0 0.0
    %797 = vmatprep.subr.mxu0 0.0
    %798 = vmatpush1.msra.mxu0 0.0
    %799 = vmatprep.subr.mxu0 0.0
    %800 = vmatpush1.msra.mxu0 0.0
    %801 = vmatprep.subr.mxu0 0.0
    %802 = vmatpush1.msra.mxu0 0.0
    %803 = vmatprep.subr.mxu0 0.0
    %804 = vmatpush1.msra.mxu0 0.0
    %805 = vmatprep.subr.mxu0 0.0
    %806 = vmatpush1.msra.mxu0 0.0
    %807 = vmatprep.subr.mxu0 0.0
    %808 = vmatpush1.msra.mxu0 0.0
    %809 = vmatprep.subr.mxu0 0.0
    %810 = vmatpush1.msra.mxu0 0.0
    %811 = vmatprep.subr.mxu0 0.0
    %812 = vmatpush1.msra.mxu0 %v569
    %813 = vmatprep.subr.mxu0 0.0
    %814 = vmatpush1.msra.mxu0 %v568
    %815 = vmatprep.subr.mxu0 0.0
    %816 = vmatpush1.msra.mxu0 %v567
    %817 = vmatprep.subr.mxu0 0.0
    %818 = vmatpush1.msra.mxu0 %v566
    %819 = vmatprep.subr.mxu0 0.0
    %820 = vmatpush1.msra.mxu0 %v565
    %821 = vmatprep.subr.mxu0 0.0
    %822 = vmatpush1.msra.mxu0 %v564
    %823 = vmatprep.subr.mxu0 0.0
    %824 = vmatpush1.msra.mxu0 %v563
    %825 = vmatprep.subr.mxu0 0.0
    %826 = vmatpush1.msra.mxu0 %v562
    %827 = vmatprep.subr.mxu0 0.0
    %828 = vmatpush2.msra.mxu0 0.0
    %829 = vmatprep.subr.mxu0 0.0
    %830 = vmatpush2.msra.mxu0 0.0
    %831 = vmatprep.subr.mxu0 0.0
    %832 = vmatpush2.msra.mxu0 0.0
    %833 = vmatprep.subr.mxu0 0.0
    %834 = vmatpush2.msra.mxu0 0.0
    %835 = vmatprep.subr.mxu0 0.0
    %836 = vmatpush2.msra.mxu0 0.0
    %837 = vmatprep.subr.mxu0 0.0
    %838 = vmatpush2.msra.mxu0 0.0
    %839 = vmatprep.subr.mxu0 0.0
    %840 = vmatpush2.msra.mxu0 0.0
    %841 = vmatprep.subr.mxu0 0.0
    %842 = vmatpush2.msra.mxu0 0.0
    %843 = vmatprep.subr.mxu0 0.0
    %844 = vmatpush2.msra.mxu0 0.0
    %845 = vmatprep.subr.mxu0 0.0
    %846 = vmatpush2.msra.mxu0 0.0
    %847 = vmatprep.subr.mxu0 0.0
    %848 = vmatpush2.msra.mxu0 0.0
    %849 = vmatprep.subr.mxu0 0.0
    %850 = vmatpush2.msra.mxu0 0.0
    %851 = vmatprep.subr.mxu0 0.0
    %852 = vmatpush2.msra.mxu0 0.0
    %853 = vmatprep.subr.mxu0 0.0
    %854 = vmatpush2.msra.mxu0 0.0
    %855 = vmatprep.subr.mxu0 0.0
    %856 = vmatpush2.msra.mxu0 0.0
    %857 = vmatprep.subr.mxu0 0.0
    %858 = vmatpush2.msra.mxu0 0.0
    %859 = vmatprep.mubr.f32.mxu0 0.0
    %860 = vmatmul.mubr.f32.gmra.mxu0 %v793
    %v861 = vpop.f32.mrf.mxu0
    %v862 = vadd.f32 0.0, %v861
    %v863 = vpop.f32.mrf.mxu0
    %864 = vdwg.mxu0
    %v865 = vmax.f32 %v784, 1.0
    %v866 = vrcp.pop %v865
    %v867 = vmul.f32 %v862, %v866
    %v868 = vsel %vm791, 1, 0
    %vm869 = vcmp.eq.s32.totalorder %v868, 1
    %v870 = vsel %vm869, %v867, 0.0
    %vm871 = vcmp.gt.f32.partialorder %v787, 0.0
    %vm872 = vcmp.gt.f32.partialorder %v790, 0.0
    %v874 = vsel %vm781, %v81, 0
    %v877 = vsel %vm781, %v82, 0
    %879 = vmatprep.subr.mxu0 0.0
    %880 = vmatpush1.msra.mxu0 0.0
    %881 = vmatprep.subr.mxu0 0.0
    %882 = vmatpush1.msra.mxu0 0.0
    %883 = vmatprep.subr.mxu0 0.0
    %884 = vmatpush1.msra.mxu0 0.0
    %885 = vmatprep.subr.mxu0 0.0
    %886 = vmatpush1.msra.mxu0 0.0
    %887 = vmatprep.subr.mxu0 0.0
    %888 = vmatpush1.msra.mxu0 0.0
    %889 = vmatprep.subr.mxu0 0.0
    %890 = vmatpush1.msra.mxu0 0.0
    %891 = vmatprep.subr.mxu0 0.0
    %892 = vmatpush1.msra.mxu0 0.0
    %893 = vmatprep.subr.mxu0 0.0
    %894 = vmatpush1.msra.mxu0 0.0
    %895 = vmatprep.subr.mxu0 0.0
    %896 = vmatpush1.msra.mxu0 %v780
    %897 = vmatprep.subr.mxu0 0.0
    %898 = vmatpush1.msra.mxu0 %v779
    %899 = vmatprep.subr.mxu0 0.0
    %900 = vmatpush1.msra.mxu0 %v778
    %901 = vmatprep.subr.mxu0 0.0
    %902 = vmatpush1.msra.mxu0 %v777
    %903 = vmatprep.subr.mxu0 0.0
    %904 = vmatpush1.msra.mxu0 %v776
    %905 = vmatprep.subr.mxu0 0.0
    %906 = vmatpush1.msra.mxu0 %v775
    %907 = vmatprep.subr.mxu0 0.0
    %908 = vmatpush1.msra.mxu0 %v774
    %909 = vmatprep.subr.mxu0 0.0
    %910 = vmatpush1.msra.mxu0 %v773
    %911 = vmatprep.subr.mxu0 0.0
    %912 = vmatpush2.msra.mxu0 0.0
    %913 = vmatprep.subr.mxu0 0.0
    %914 = vmatpush2.msra.mxu0 0.0
    %915 = vmatprep.subr.mxu0 0.0
    %916 = vmatpush2.msra.mxu0 0.0
    %917 = vmatprep.subr.mxu0 0.0
    %918 = vmatpush2.msra.mxu0 0.0
    %919 = vmatprep.subr.mxu0 0.0
    %920 = vmatpush2.msra.mxu0 0.0
    %921 = vmatprep.subr.mxu0 0.0
    %922 = vmatpush2.msra.mxu0 0.0
    %923 = vmatprep.subr.mxu0 0.0
    %924 = vmatpush2.msra.mxu0 0.0
    %925 = vmatprep.subr.mxu0 0.0
    %926 = vmatpush2.msra.mxu0 0.0
    %927 = vmatprep.subr.mxu0 0.0
    %928 = vmatpush2.msra.mxu0 0.0
    %929 = vmatprep.subr.mxu0 0.0
    %930 = vmatpush2.msra.mxu0 0.0
    %931 = vmatprep.subr.mxu0 0.0
    %932 = vmatpush2.msra.mxu0 0.0
    %933 = vmatprep.subr.mxu0 0.0
    %934 = vmatpush2.msra.mxu0 0.0
    %935 = vmatprep.subr.mxu0 0.0
    %936 = vmatpush2.msra.mxu0 0.0
    %937 = vmatprep.subr.mxu0 0.0
    %938 = vmatpush2.msra.mxu0 0.0
    %939 = vmatprep.subr.mxu0 0.0
    %940 = vmatpush2.msra.mxu0 0.0
    %941 = vmatprep.subr.mxu0 0.0
    %942 = vmatpush2.msra.mxu0 0.0
    %943 = vmatprep.mubr.f32.mxu0 0.0
    %944 = vmatmul.mubr.f32.gmra.mxu0 %v874
    %v945 = vpop.f32.mrf.mxu0
    %v946 = vadd.f32 0.0, %v945
    %v947 = vpop.f32.mrf.mxu0
    %948 = vmatprep.mubr.f32.mxu0 0.0
    %949 = vmatmul.mubr.f32.gmra.mxu0 %v877
    %v950 = vpop.f32.mrf.mxu0
    %v951 = vadd.f32 0.0, %v950
    %v952 = vpop.f32.mrf.mxu0
    %953 = vdwg.mxu0
    %v954 = vmax.f32 %v787, 1.0
    %v955 = vmax.f32 %v790, 1.0
    %v956 = vrcp.pop %v954
    %v957 = vmul.f32 %v946, %v956
    %v958 = vrcp.pop %v955
    %v959 = vmul.f32 %v951, %v958
    %v960 = vsel %vm871, 1, 0
    %v961 = vsel %vm872, 1, 0
    %vm962 = vcmp.eq.s32.totalorder %v960, 1
    %vm963 = vcmp.eq.s32.totalorder %v961, 1
    %v964 = vsel %vm962, %v957, 0.0
    %v965 = vsel %vm963, %v959, 0.0
    %v966 = vld [vmem:[%s10] sm:$0xff]
    %v967 = vld [vmem:[%s10 + $0x8] sm:$0xff]
    %v968 = vld [vmem:[%s10 + $0x10] sm:$0xff]
    %v969 = vld [vmem:[%s10 + $0x18] sm:$0xff]
    %v970 = vld [vmem:[%s11] sm:$0xff]
    %v971 = vld [vmem:[%s11 + $0x8] sm:$0xff]
    %v972 = vld [vmem:[%s11 + $0x10] sm:$0xff]
    %v973 = vld [vmem:[%s11 + $0x18] sm:$0xff]
    %v975 = vsel %vm351, %v870, 0
    %977 = vmatprep.subr.mxu0 0.0
    %978 = vmatpush1.msra.mxu0 0.0
    %979 = vmatprep.subr.mxu0 0.0
    %980 = vmatpush1.msra.mxu0 0.0
    %981 = vmatprep.subr.mxu0 0.0
    %982 = vmatpush1.msra.mxu0 0.0
    %983 = vmatprep.subr.mxu0 0.0
    %984 = vmatpush1.msra.mxu0 0.0
    %985 = vmatprep.subr.mxu0 0.0
    %986 = vmatpush1.msra.mxu0 0.0
    %987 = vmatprep.subr.mxu0 0.0
    %988 = vmatpush1.msra.mxu0 0.0
    %989 = vmatprep.subr.mxu0 0.0
    %990 = vmatpush1.msra.mxu0 0.0
    %991 = vmatprep.subr.mxu0 0.0
    %992 = vmatpush1.msra.mxu0 0.0
    %993 = vmatprep.subr.mxu0 0.0
    %994 = vmatpush1.msra.mxu0 0.0
    %995 = vmatprep.subr.mxu0 0.0
    %996 = vmatpush1.msra.mxu0 0.0
    %997 = vmatprep.subr.mxu0 0.0
    %998 = vmatpush1.msra.mxu0 0.0
    %999 = vmatprep.subr.mxu0 0.0
    %1000 = vmatpush1.msra.mxu0 0.0
    %1001 = vmatprep.subr.mxu0 0.0
    %1002 = vmatpush1.msra.mxu0 %v973
    %1003 = vmatprep.subr.mxu0 0.0
    %1004 = vmatpush1.msra.mxu0 %v972
    %1005 = vmatprep.subr.mxu0 0.0
    %1006 = vmatpush1.msra.mxu0 %v971
    %1007 = vmatprep.subr.mxu0 0.0
    %1008 = vmatpush1.msra.mxu0 %v970
    %1009 = vmatprep.subr.mxu0 0.0
    %1010 = vmatpush2.msra.mxu0 0.0
    %1011 = vmatprep.subr.mxu0 0.0
    %1012 = vmatpush2.msra.mxu0 0.0
    %1013 = vmatprep.subr.mxu0 0.0
    %1014 = vmatpush2.msra.mxu0 0.0
    %1015 = vmatprep.subr.mxu0 0.0
    %1016 = vmatpush2.msra.mxu0 0.0
    %1017 = vmatprep.subr.mxu0 0.0
    %1018 = vmatpush2.msra.mxu0 0.0
    %1019 = vmatprep.subr.mxu0 0.0
    %1020 = vmatpush2.msra.mxu0 0.0
    %1021 = vmatprep.subr.mxu0 0.0
    %1022 = vmatpush2.msra.mxu0 0.0
    %1023 = vmatprep.subr.mxu0 0.0
    %1024 = vmatpush2.msra.mxu0 0.0
    %1025 = vmatprep.subr.mxu0 0.0
    %1026 = vmatpush2.msra.mxu0 0.0
    %1027 = vmatprep.subr.mxu0 0.0
    %1028 = vmatpush2.msra.mxu0 0.0
    %1029 = vmatprep.subr.mxu0 0.0
    %1030 = vmatpush2.msra.mxu0 0.0
    %1031 = vmatprep.subr.mxu0 0.0
    %1032 = vmatpush2.msra.mxu0 0.0
    %1033 = vmatprep.subr.mxu0 0.0
    %1034 = vmatpush2.msra.mxu0 0.0
    %1035 = vmatprep.subr.mxu0 0.0
    %1036 = vmatpush2.msra.mxu0 0.0
    %1037 = vmatprep.subr.mxu0 0.0
    %1038 = vmatpush2.msra.mxu0 0.0
    %1039 = vmatprep.subr.mxu0 0.0
    %1040 = vmatpush2.msra.mxu0 0.0
    %1041 = vmatprep.mubr.f32.mxu0 0.0
    %1042 = vmatmul.mubr.f32.gmra.mxu0 %v975
    %v1043 = vpop.f32.mrf.mxu0
    %v1044 = vadd.f32 0.0, %v1043
    %v1045 = vpop.f32.mrf.mxu0
    %1046 = vdwg.mxu0
    %1047 = vmatprep.subr.mxu0 0.0
    %1048 = vmatpush1.msra.mxu0 0.0
    %1049 = vmatprep.subr.mxu0 0.0
    %1050 = vmatpush1.msra.mxu0 0.0
    %1051 = vmatprep.subr.mxu0 0.0
    %1052 = vmatpush1.msra.mxu0 0.0
    %1053 = vmatprep.subr.mxu0 0.0
    %1054 = vmatpush1.msra.mxu0 0.0
    %1055 = vmatprep.subr.mxu0 0.0
    %1056 = vmatpush1.msra.mxu0 0.0
    %1057 = vmatprep.subr.mxu0 0.0
    %1058 = vmatpush1.msra.mxu0 0.0
    %1059 = vmatprep.subr.mxu0 0.0
    %1060 = vmatpush1.msra.mxu0 0.0
    %1061 = vmatprep.subr.mxu0 0.0
    %1062 = vmatpush1.msra.mxu0 0.0
    %1063 = vmatprep.subr.mxu0 0.0
    %1064 = vmatpush1.msra.mxu0 0.0
    %1065 = vmatprep.subr.mxu0 0.0
    %1066 = vmatpush1.msra.mxu0 0.0
    %1067 = vmatprep.subr.mxu0 0.0
    %1068 = vmatpush1.msra.mxu0 0.0
    %1069 = vmatprep.subr.mxu0 0.0
    %1070 = vmatpush1.msra.mxu0 0.0
    %1071 = vmatprep.subr.mxu0 0.0
    %1072 = vmatpush1.msra.mxu0 %v969
    %1073 = vmatprep.subr.mxu0 0.0
    %1074 = vmatpush1.msra.mxu0 %v968
    %1075 = vmatprep.subr.mxu0 0.0
    %1076 = vmatpush1.msra.mxu0 %v967
    %1077 = vmatprep.subr.mxu0 0.0
    %1078 = vmatpush1.msra.mxu0 %v966
    %1079 = vmatprep.subr.mxu0 0.0
    %1080 = vmatpush2.msra.mxu0 0.0
    %1081 = vmatprep.subr.mxu0 0.0
    %1082 = vmatpush2.msra.mxu0 0.0
    %1083 = vmatprep.subr.mxu0 0.0
    %1084 = vmatpush2.msra.mxu0 0.0
    %1085 = vmatprep.subr.mxu0 0.0
    %1086 = vmatpush2.msra.mxu0 0.0
    %1087 = vmatprep.subr.mxu0 0.0
    %1088 = vmatpush2.msra.mxu0 0.0
    %1089 = vmatprep.subr.mxu0 0.0
    %1090 = vmatpush2.msra.mxu0 0.0
    %1091 = vmatprep.subr.mxu0 0.0
    %1092 = vmatpush2.msra.mxu0 0.0
    %1093 = vmatprep.subr.mxu0 0.0
    %1094 = vmatpush2.msra.mxu0 0.0
    %1095 = vmatprep.subr.mxu0 0.0
    %1096 = vmatpush2.msra.mxu0 0.0
    %1097 = vmatprep.subr.mxu0 0.0
    %1098 = vmatpush2.msra.mxu0 0.0
    %1099 = vmatprep.subr.mxu0 0.0
    %1100 = vmatpush2.msra.mxu0 0.0
    %1101 = vmatprep.subr.mxu0 0.0
    %1102 = vmatpush2.msra.mxu0 0.0
    %1103 = vmatprep.subr.mxu0 0.0
    %1104 = vmatpush2.msra.mxu0 0.0
    %1105 = vmatprep.subr.mxu0 0.0
    %1106 = vmatpush2.msra.mxu0 0.0
    %1107 = vmatprep.subr.mxu0 0.0
    %1108 = vmatpush2.msra.mxu0 0.0
    %1109 = vmatprep.subr.mxu0 0.0
    %1110 = vmatpush2.msra.mxu0 0.0
    %1111 = vmatprep.mubr.f32.mxu0 0.0
    %1112 = vmatmul.mubr.f32.gmra.mxu0 %v571
    %v1113 = vpop.f32.mrf.mxu0
    %v1114 = vadd.f32 %v1044, %v1113
    %v1115 = vpop.f32.mrf.mxu0
    %1116 = vdwg.mxu0
    %v1117 = vld [vmem:[%s12] sm:$0x1]
    %v1119 = vlaneseq
    %v1120 = vshrl.u32 %v1119, 7
    %v1121 = vsub.s32 0, %v1120
    %v1122 = vrot.slane %v1117, %v1121
    %v1124 = vadd.f32 %v1114, %v1122
    %v1126 = vsel %vm351, %v964, 0
    %v1129 = vsel %vm351, %v965, 0
    %1131 = vmatprep.subr.mxu0 0.0
    %1132 = vmatpush1.msra.mxu0 0.0
    %1133 = vmatprep.subr.mxu0 0.0
    %1134 = vmatpush1.msra.mxu0 0.0
    %1135 = vmatprep.subr.mxu0 0.0
    %1136 = vmatpush1.msra.mxu0 0.0
    %1137 = vmatprep.subr.mxu0 0.0
    %1138 = vmatpush1.msra.mxu0 0.0
    %1139 = vmatprep.subr.mxu0 0.0
    %1140 = vmatpush1.msra.mxu0 0.0
    %1141 = vmatprep.subr.mxu0 0.0
    %1142 = vmatpush1.msra.mxu0 0.0
    %1143 = vmatprep.subr.mxu0 0.0
    %1144 = vmatpush1.msra.mxu0 0.0
    %1145 = vmatprep.subr.mxu0 0.0
    %1146 = vmatpush1.msra.mxu0 0.0
    %1147 = vmatprep.subr.mxu0 0.0
    %1148 = vmatpush1.msra.mxu0 0.0
    %1149 = vmatprep.subr.mxu0 0.0
    %1150 = vmatpush1.msra.mxu0 0.0
    %1151 = vmatprep.subr.mxu0 0.0
    %1152 = vmatpush1.msra.mxu0 0.0
    %1153 = vmatprep.subr.mxu0 0.0
    %1154 = vmatpush1.msra.mxu0 0.0
    %1155 = vmatprep.subr.mxu0 0.0
    %1156 = vmatpush1.msra.mxu0 %v973
    %1157 = vmatprep.subr.mxu0 0.0
    %1158 = vmatpush1.msra.mxu0 %v972
    %1159 = vmatprep.subr.mxu0 0.0
    %1160 = vmatpush1.msra.mxu0 %v971
    %1161 = vmatprep.subr.mxu0 0.0
    %1162 = vmatpush1.msra.mxu0 %v970
    %1163 = vmatprep.subr.mxu0 0.0
    %1164 = vmatpush2.msra.mxu0 0.0
    %1165 = vmatprep.subr.mxu0 0.0
    %1166 = vmatpush2.msra.mxu0 0.0
    %1167 = vmatprep.subr.mxu0 0.0
    %1168 = vmatpush2.msra.mxu0 0.0
    %1169 = vmatprep.subr.mxu0 0.0
    %1170 = vmatpush2.msra.mxu0 0.0
    %1171 = vmatprep.subr.mxu0 0.0
    %1172 = vmatpush2.msra.mxu0 0.0
    %1173 = vmatprep.subr.mxu0 0.0
    %1174 = vmatpush2.msra.mxu0 0.0
    %1175 = vmatprep.subr.mxu0 0.0
    %1176 = vmatpush2.msra.mxu0 0.0
    %1177 = vmatprep.subr.mxu0 0.0
    %1178 = vmatpush2.msra.mxu0 0.0
    %1179 = vmatprep.subr.mxu0 0.0
    %1180 = vmatpush2.msra.mxu0 0.0
    %1181 = vmatprep.subr.mxu0 0.0
    %1182 = vmatpush2.msra.mxu0 0.0
    %1183 = vmatprep.subr.mxu0 0.0
    %1184 = vmatpush2.msra.mxu0 0.0
    %1185 = vmatprep.subr.mxu0 0.0
    %1186 = vmatpush2.msra.mxu0 0.0
    %1187 = vmatprep.subr.mxu0 0.0
    %1188 = vmatpush2.msra.mxu0 0.0
    %1189 = vmatprep.subr.mxu0 0.0
    %1190 = vmatpush2.msra.mxu0 0.0
    %1191 = vmatprep.subr.mxu0 0.0
    %1192 = vmatpush2.msra.mxu0 0.0
    %1193 = vmatprep.subr.mxu0 0.0
    %1194 = vmatpush2.msra.mxu0 0.0
    %1195 = vmatprep.mubr.f32.mxu0 0.0
    %1196 = vmatmul.mubr.f32.gmra.mxu0 %v1126
    %v1197 = vpop.f32.mrf.mxu0
    %v1198 = vadd.f32 0.0, %v1197
    %v1199 = vpop.f32.mrf.mxu0
    %1200 = vmatprep.mubr.f32.mxu0 0.0
    %1201 = vmatmul.mubr.f32.gmra.mxu0 %v1129
    %v1202 = vpop.f32.mrf.mxu0
    %v1203 = vadd.f32 0.0, %v1202
    %v1204 = vpop.f32.mrf.mxu0
    %1205 = vdwg.mxu0
    %1206 = vmatprep.subr.mxu0 0.0
    %1207 = vmatpush1.msra.mxu0 0.0
    %1208 = vmatprep.subr.mxu0 0.0
    %1209 = vmatpush1.msra.mxu0 0.0
    %1210 = vmatprep.subr.mxu0 0.0
    %1211 = vmatpush1.msra.mxu0 0.0
    %1212 = vmatprep.subr.mxu0 0.0
    %1213 = vmatpush1.msra.mxu0 0.0
    %1214 = vmatprep.subr.mxu0 0.0
    %1215 = vmatpush1.msra.mxu0 0.0
    %1216 = vmatprep.subr.mxu0 0.0
    %1217 = vmatpush1.msra.mxu0 0.0
    %1218 = vmatprep.subr.mxu0 0.0
    %1219 = vmatpush1.msra.mxu0 0.0
    %1220 = vmatprep.subr.mxu0 0.0
    %1221 = vmatpush1.msra.mxu0 0.0
    %1222 = vmatprep.subr.mxu0 0.0
    %1223 = vmatpush1.msra.mxu0 0.0
    %1224 = vmatprep.subr.mxu0 0.0
    %1225 = vmatpush1.msra.mxu0 0.0
    %1226 = vmatprep.subr.mxu0 0.0
    %1227 = vmatpush1.msra.mxu0 0.0
    %1228 = vmatprep.subr.mxu0 0.0
    %1229 = vmatpush1.msra.mxu0 0.0
    %1230 = vmatprep.subr.mxu0 0.0
    %1231 = vmatpush1.msra.mxu0 %v969
    %1232 = vmatprep.subr.mxu0 0.0
    %1233 = vmatpush1.msra.mxu0 %v968
    %1234 = vmatprep.subr.mxu0 0.0
    %1235 = vmatpush1.msra.mxu0 %v967
    %1236 = vmatprep.subr.mxu0 0.0
    %1237 = vmatpush1.msra.mxu0 %v966
    %1238 = vmatprep.subr.mxu0 0.0
    %1239 = vmatpush2.msra.mxu0 0.0
    %1240 = vmatprep.subr.mxu0 0.0
    %1241 = vmatpush2.msra.mxu0 0.0
    %1242 = vmatprep.subr.mxu0 0.0
    %1243 = vmatpush2.msra.mxu0 0.0
    %1244 = vmatprep.subr.mxu0 0.0
    %1245 = vmatpush2.msra.mxu0 0.0
    %1246 = vmatprep.subr.mxu0 0.0
    %1247 = vmatpush2.msra.mxu0 0.0
    %1248 = vmatprep.subr.mxu0 0.0
    %1249 = vmatpush2.msra.mxu0 0.0
    %1250 = vmatprep.subr.mxu0 0.0
    %1251 = vmatpush2.msra.mxu0 0.0
    %1252 = vmatprep.subr.mxu0 0.0
    %1253 = vmatpush2.msra.mxu0 0.0
    %1254 = vmatprep.subr.mxu0 0.0
    %1255 = vmatpush2.msra.mxu0 0.0
    %1256 = vmatprep.subr.mxu0 0.0
    %1257 = vmatpush2.msra.mxu0 0.0
    %1258 = vmatprep.subr.mxu0 0.0
    %1259 = vmatpush2.msra.mxu0 0.0
    %1260 = vmatprep.subr.mxu0 0.0
    %1261 = vmatpush2.msra.mxu0 0.0
    %1262 = vmatprep.subr.mxu0 0.0
    %1263 = vmatpush2.msra.mxu0 0.0
    %1264 = vmatprep.subr.mxu0 0.0
    %1265 = vmatpush2.msra.mxu0 0.0
    %1266 = vmatprep.subr.mxu0 0.0
    %1267 = vmatpush2.msra.mxu0 0.0
    %1268 = vmatprep.subr.mxu0 0.0
    %1269 = vmatpush2.msra.mxu0 0.0
    %1270 = vmatprep.mubr.f32.mxu0 0.0
    %1271 = vmatmul.mubr.f32.gmra.mxu0 %v353
    %v1272 = vpop.f32.mrf.mxu0
    %v1273 = vadd.f32 %v1198, %v1272
    %v1274 = vpop.f32.mrf.mxu0
    %1275 = vmatprep.mubr.f32.mxu0 0.0
    %1276 = vmatmul.mubr.f32.gmra.mxu0 %v356
    %v1277 = vpop.f32.mrf.mxu0
    %v1278 = vadd.f32 %v1203, %v1277
    %v1279 = vpop.f32.mrf.mxu0
    %1280 = vdwg.mxu0
    %v1281 = vadd.f32 %v1273, %v1122
    %v1282 = vadd.f32 %v1278, %v1122
    %1283 = vst.msk [vmem:[#allocation2] sm:$0xff] %vm351, %v1124
    %1284 = vst.msk [vmem:[#allocation4] sm:$0xff] %vm351, %v1281
    %1285 = vst.msk [vmem:[#allocation4 + $0x8] sm:$0xff] %vm351, %v1282
    %v1286 = vld [vmem:[%s14] sm:$0xff]
    %v1287 = vld [vmem:[%s14 + $0x8] sm:$0xff]
    %v1288 = vld [vmem:[%s14 + $0x10] sm:$0xff]
    %v1289 = vld [vmem:[%s14 + $0x18] sm:$0xff]
    %v1291 = vsel %vm351, %v1124, 0
    %1293 = vmatprep.subr.mxu0 0.0
    %1294 = vmatpush1.msra.mxu0 0.0
    %1295 = vmatprep.subr.mxu0 0.0
    %1296 = vmatpush1.msra.mxu0 0.0
    %1297 = vmatprep.subr.mxu0 0.0
    %1298 = vmatpush1.msra.mxu0 0.0
    %1299 = vmatprep.subr.mxu0 0.0
    %1300 = vmatpush1.msra.mxu0 0.0
    %1301 = vmatprep.subr.mxu0 0.0
    %1302 = vmatpush1.msra.mxu0 0.0
    %1303 = vmatprep.subr.mxu0 0.0
    %1304 = vmatpush1.msra.mxu0 0.0
    %1305 = vmatprep.subr.mxu0 0.0
    %1306 = vmatpush1.msra.mxu0 0.0
    %1307 = vmatprep.subr.mxu0 0.0
    %1308 = vmatpush1.msra.mxu0 0.0
    %1309 = vmatprep.subr.mxu0 0.0
    %1310 = vmatpush1.msra.mxu0 0.0
    %1311 = vmatprep.subr.mxu0 0.0
    %1312 = vmatpush1.msra.mxu0 0.0
    %1313 = vmatprep.subr.mxu0 0.0
    %1314 = vmatpush1.msra.mxu0 0.0
    %1315 = vmatprep.subr.mxu0 0.0
    %1316 = vmatpush1.msra.mxu0 0.0
    %1317 = vmatprep.subr.mxu0 0.0
    %1318 = vmatpush1.msra.mxu0 %v1289
    %1319 = vmatprep.subr.mxu0 0.0
    %1320 = vmatpush1.msra.mxu0 %v1288
    %1321 = vmatprep.subr.mxu0 0.0
    %1322 = vmatpush1.msra.mxu0 %v1287
    %1323 = vmatprep.subr.mxu0 0.0
    %1324 = vmatpush1.msra.mxu0 %v1286
    %1325 = vmatprep.subr.mxu0 0.0
    %1326 = vmatpush2.msra.mxu0 0.0
    %1327 = vmatprep.subr.mxu0 0.0
    %1328 = vmatpush2.msra.mxu0 0.0
    %1329 = vmatprep.subr.mxu0 0.0
    %1330 = vmatpush2.msra.mxu0 0.0
    %1331 = vmatprep.subr.mxu0 0.0
    %1332 = vmatpush2.msra.mxu0 0.0
    %1333 = vmatprep.subr.mxu0 0.0
    %1334 = vmatpush2.msra.mxu0 0.0
    %1335 = vmatprep.subr.mxu0 0.0
    %1336 = vmatpush2.msra.mxu0 0.0
    %1337 = vmatprep.subr.mxu0 0.0
    %1338 = vmatpush2.msra.mxu0 0.0
    %1339 = vmatprep.subr.mxu0 0.0
    %1340 = vmatpush2.msra.mxu0 0.0
    %1341 = vmatprep.subr.mxu0 0.0
    %1342 = vmatpush2.msra.mxu0 0.0
    %1343 = vmatprep.subr.mxu0 0.0
    %1344 = vmatpush2.msra.mxu0 0.0
    %1345 = vmatprep.subr.mxu0 0.0
    %1346 = vmatpush2.msra.mxu0 0.0
    %1347 = vmatprep.subr.mxu0 0.0
    %1348 = vmatpush2.msra.mxu0 0.0
    %1349 = vmatprep.subr.mxu0 0.0
    %1350 = vmatpush2.msra.mxu0 0.0
    %1351 = vmatprep.subr.mxu0 0.0
    %1352 = vmatpush2.msra.mxu0 0.0
    %1353 = vmatprep.subr.mxu0 0.0
    %1354 = vmatpush2.msra.mxu0 0.0
    %1355 = vmatprep.subr.mxu0 0.0
    %1356 = vmatpush2.msra.mxu0 0.0
    %1357 = vmatprep.mubr.f32.mxu0 0.0
    %1358 = vmatmul.mubr.f32.gmra.mxu0 %v1291
    %v1359 = vpop.f32.mrf.mxu0
    %v1360 = vadd.f32 0.0, %v1359
    %v1361 = vpop.f32.mrf.mxu0
    %1362 = vdwg.mxu0
    %v1363 = vld [vmem:[%s15] sm:$0xff]
    %v1364 = vld [vmem:[%s15 + $0x8] sm:$0xff]
    %v1365 = vld [vmem:[%s15 + $0x10] sm:$0xff]
    %v1366 = vld [vmem:[%s15 + $0x18] sm:$0xff]
    %v1368 = vsel %vm351, %v1281, 0
    %v1371 = vsel %vm351, %v1282, 0
    %1373 = vmatprep.subr.mxu0 0.0
    %1374 = vmatpush1.msra.mxu0 0.0
    %1375 = vmatprep.subr.mxu0 0.0
    %1376 = vmatpush1.msra.mxu0 0.0
    %1377 = vmatprep.subr.mxu0 0.0
    %1378 = vmatpush1.msra.mxu0 0.0
    %1379 = vmatprep.subr.mxu0 0.0
    %1380 = vmatpush1.msra.mxu0 0.0
    %1381 = vmatprep.subr.mxu0 0.0
    %1382 = vmatpush1.msra.mxu0 0.0
    %1383 = vmatprep.subr.mxu0 0.0
    %1384 = vmatpush1.msra.mxu0 0.0
    %1385 = vmatprep.subr.mxu0 0.0
    %1386 = vmatpush1.msra.mxu0 0.0
    %1387 = vmatprep.subr.mxu0 0.0
    %1388 = vmatpush1.msra.mxu0 0.0
    %1389 = vmatprep.subr.mxu0 0.0
    %1390 = vmatpush1.msra.mxu0 0.0
    %1391 = vmatprep.subr.mxu0 0.0
    %1392 = vmatpush1.msra.mxu0 0.0
    %1393 = vmatprep.subr.mxu0 0.0
    %1394 = vmatpush1.msra.mxu0 0.0
    %1395 = vmatprep.subr.mxu0 0.0
    %1396 = vmatpush1.msra.mxu0 0.0
    %1397 = vmatprep.subr.mxu0 0.0
    %1398 = vmatpush1.msra.mxu0 %v1366
    %1399 = vmatprep.subr.mxu0 0.0
    %1400 = vmatpush1.msra.mxu0 %v1365
    %1401 = vmatprep.subr.mxu0 0.0
    %1402 = vmatpush1.msra.mxu0 %v1364
    %1403 = vmatprep.subr.mxu0 0.0
    %1404 = vmatpush1.msra.mxu0 %v1363
    %1405 = vmatprep.subr.mxu0 0.0
    %1406 = vmatpush2.msra.mxu0 0.0
    %1407 = vmatprep.subr.mxu0 0.0
    %1408 = vmatpush2.msra.mxu0 0.0
    %1409 = vmatprep.subr.mxu0 0.0
    %1410 = vmatpush2.msra.mxu0 0.0
    %1411 = vmatprep.subr.mxu0 0.0
    %1412 = vmatpush2.msra.mxu0 0.0
    %1413 = vmatprep.subr.mxu0 0.0
    %1414 = vmatpush2.msra.mxu0 0.0
    %1415 = vmatprep.subr.mxu0 0.0
    %1416 = vmatpush2.msra.mxu0 0.0
    %1417 = vmatprep.subr.mxu0 0.0
    %1418 = vmatpush2.msra.mxu0 0.0
    %1419 = vmatprep.subr.mxu0 0.0
    %1420 = vmatpush2.msra.mxu0 0.0
    %1421 = vmatprep.subr.mxu0 0.0
    %1422 = vmatpush2.msra.mxu0 0.0
    %1423 = vmatprep.subr.mxu0 0.0
    %1424 = vmatpush2.msra.mxu0 0.0
    %1425 = vmatprep.subr.mxu0 0.0
    %1426 = vmatpush2.msra.mxu0 0.0
    %1427 = vmatprep.subr.mxu0 0.0
    %1428 = vmatpush2.msra.mxu0 0.0
    %1429 = vmatprep.subr.mxu0 0.0
    %1430 = vmatpush2.msra.mxu0 0.0
    %1431 = vmatprep.subr.mxu0 0.0
    %1432 = vmatpush2.msra.mxu0 0.0
    %1433 = vmatprep.subr.mxu0 0.0
    %1434 = vmatpush2.msra.mxu0 0.0
    %1435 = vmatprep.subr.mxu0 0.0
    %1436 = vmatpush2.msra.mxu0 0.0
    %1437 = vmatprep.mubr.f32.mxu0 0.0
    %1438 = vmatmul.mubr.f32.gmra.mxu0 %v1368
    %v1439 = vpop.f32.mrf.mxu0
    %v1440 = vadd.f32 0.0, %v1439
    %v1441 = vpop.f32.mrf.mxu0
    %1442 = vmatprep.mubr.f32.mxu0 0.0
    %1443 = vmatmul.mubr.f32.gmra.mxu0 %v1371
    %v1444 = vpop.f32.mrf.mxu0
    %v1445 = vadd.f32 0.0, %v1444
    %v1446 = vpop.f32.mrf.mxu0
    %1447 = vdwg.mxu0
    %v1448 = vld [vmem:[%s13] sm:$0xff]
    %v1449 = vld [vmem:[%s13 + $0x8] sm:$0xff]
    %1450 = vmatprep.subr.mxu0 0.0
    %1451 = vmatpush1.msra.mxu0 0.0
    %1452 = vmatprep.subr.mxu0 0.0
    %1453 = vmatpush1.msra.mxu0 0.0
    %1454 = vmatprep.subr.mxu0 0.0
    %1455 = vmatpush1.msra.mxu0 0.0
    %1456 = vmatprep.subr.mxu0 0.0
    %1457 = vmatpush1.msra.mxu0 0.0
    %1458 = vmatprep.subr.mxu0 0.0
    %1459 = vmatpush1.msra.mxu0 0.0
    %1460 = vmatprep.subr.mxu0 0.0
    %1461 = vmatpush1.msra.mxu0 0.0
    %1462 = vmatprep.subr.mxu0 0.0
    %1463 = vmatpush1.msra.mxu0 0.0
    %1464 = vmatprep.subr.mxu0 0.0
    %1465 = vmatpush1.msra.mxu0 0.0
    %1466 = vmatprep.subr.mxu0 0.0
    %1467 = vmatpush1.msra.mxu0 0.0
    %1468 = vmatprep.subr.mxu0 0.0
    %1469 = vmatpush1.msra.mxu0 0.0
    %1470 = vmatprep.subr.mxu0 0.0
    %1471 = vmatpush1.msra.mxu0 0.0
    %1472 = vmatprep.subr.mxu0 0.0
    %1473 = vmatpush1.msra.mxu0 0.0
    %1474 = vmatprep.subr.mxu0 0.0
    %1475 = vmatpush1.msra.mxu0 0.0
    %1476 = vmatprep.subr.mxu0 0.0
    %1477 = vmatpush1.msra.mxu0 0.0
    %1478 = vmatprep.subr.mxu0 0.0
    %1479 = vmatpush1.msra.mxu0 0.0
    %1480 = vmatprep.subr.mxu0 0.0
    %1481 = vmatpush1.msra.mxu0 %v1360
    %1482 = vmatprep.subr.mxu0 0.0
    %1483 = vmatpush2.msra.mxu0 0.0
    %1484 = vmatprep.subr.mxu0 0.0
    %1485 = vmatpush2.msra.mxu0 0.0
    %1486 = vmatprep.subr.mxu0 0.0
    %1487 = vmatpush2.msra.mxu0 0.0
    %1488 = vmatprep.subr.mxu0 0.0
    %1489 = vmatpush2.msra.mxu0 0.0
    %1490 = vmatprep.subr.mxu0 0.0
    %1491 = vmatpush2.msra.mxu0 0.0
    %1492 = vmatprep.subr.mxu0 0.0
    %1493 = vmatpush2.msra.mxu0 0.0
    %1494 = vmatprep.subr.mxu0 0.0
    %1495 = vmatpush2.msra.mxu0 0.0
    %1496 = vmatprep.subr.mxu0 0.0
    %1497 = vmatpush2.msra.mxu0 0.0
    %1498 = vmatprep.subr.mxu0 0.0
    %1499 = vmatpush2.msra.mxu0 0.0
    %1500 = vmatprep.subr.mxu0 0.0
    %1501 = vmatpush2.msra.mxu0 0.0
    %1502 = vmatprep.subr.mxu0 0.0
    %1503 = vmatpush2.msra.mxu0 0.0
    %1504 = vmatprep.subr.mxu0 0.0
    %1505 = vmatpush2.msra.mxu0 0.0
    %1506 = vmatprep.subr.mxu0 0.0
    %1507 = vmatpush2.msra.mxu0 0.0
    %1508 = vmatprep.subr.mxu0 0.0
    %1509 = vmatpush2.msra.mxu0 0.0
    %1510 = vmatprep.subr.mxu0 0.0
    %1511 = vmatpush2.msra.mxu0 0.0
    %1512 = vmatprep.subr.mxu0 0.0
    %1513 = vmatpush2.msra.mxu0 0.0
    %1514 = vmatprep.mubr.f32.mxu0 0.0
    %1515 = vmatmul.mubr.f32.gmra.mxu0 %v645
    %v1516 = vpop.f32.mrf.mxu0
    %v1517 = vadd.f32 0.0, %v1516
    %v1518 = vpop.f32.mrf.mxu0
    %1519 = vmatprep.mubr.f32.mxu0 0.0
    %1520 = vmatmul.mubr.f32.gmra.mxu0 %v648
    %v1521 = vpop.f32.mrf.mxu0
    %v1522 = vadd.f32 0.0, %v1521
    %v1523 = vpop.f32.mrf.mxu0
    %1524 = vmatprep.mubr.f32.mxu0 0.0
    %1525 = vmatmul.mubr.f32.gmra.mxu0 %v651
    %v1526 = vpop.f32.mrf.mxu0
    %v1527 = vadd.f32 0.0, %v1526
    %v1528 = vpop.f32.mrf.mxu0
    %1529 = vmatprep.mubr.f32.mxu0 0.0
    %1530 = vmatmul.mubr.f32.gmra.mxu0 %v654
    %v1531 = vpop.f32.mrf.mxu0
    %v1532 = vadd.f32 0.0, %v1531
    %v1533 = vpop.f32.mrf.mxu0
    %1534 = vmatprep.mubr.f32.mxu0 0.0
    %1535 = vmatmul.mubr.f32.gmra.mxu0 %v657
    %v1536 = vpop.f32.mrf.mxu0
    %v1537 = vadd.f32 0.0, %v1536
    %v1538 = vpop.f32.mrf.mxu0
    %1539 = vmatprep.mubr.f32.mxu0 0.0
    %1540 = vmatmul.mubr.f32.gmra.mxu0 %v660
    %v1541 = vpop.f32.mrf.mxu0
    %v1542 = vadd.f32 0.0, %v1541
    %v1543 = vpop.f32.mrf.mxu0
    %1544 = vmatprep.mubr.f32.mxu0 0.0
    %1545 = vmatmul.mubr.f32.gmra.mxu0 %v663
    %v1546 = vpop.f32.mrf.mxu0
    %v1547 = vadd.f32 0.0, %v1546
    %v1548 = vpop.f32.mrf.mxu0
    %1549 = vmatprep.mubr.f32.mxu0 0.0
    %1550 = vmatmul.mubr.f32.gmra.mxu0 %v666
    %v1551 = vpop.f32.mrf.mxu0
    %v1552 = vadd.f32 0.0, %v1551
    %v1553 = vpop.f32.mrf.mxu0
    %1554 = vdwg.mxu0
    %1555 = vmatprep.subr.mxu0 0.0
    %1556 = vmatpush1.msra.mxu0 0.0
    %1557 = vmatprep.subr.mxu0 0.0
    %1558 = vmatpush1.msra.mxu0 0.0
    %1559 = vmatprep.subr.mxu0 0.0
    %1560 = vmatpush1.msra.mxu0 0.0
    %1561 = vmatprep.subr.mxu0 0.0
    %1562 = vmatpush1.msra.mxu0 0.0
    %1563 = vmatprep.subr.mxu0 0.0
    %1564 = vmatpush1.msra.mxu0 0.0
    %1565 = vmatprep.subr.mxu0 0.0
    %1566 = vmatpush1.msra.mxu0 0.0
    %1567 = vmatprep.subr.mxu0 0.0
    %1568 = vmatpush1.msra.mxu0 0.0
    %1569 = vmatprep.subr.mxu0 0.0
    %1570 = vmatpush1.msra.mxu0 0.0
    %1571 = vmatprep.subr.mxu0 0.0
    %1572 = vmatpush1.msra.mxu0 0.0
    %1573 = vmatprep.subr.mxu0 0.0
    %1574 = vmatpush1.msra.mxu0 0.0
    %1575 = vmatprep.subr.mxu0 0.0
    %1576 = vmatpush1.msra.mxu0 0.0
    %1577 = vmatprep.subr.mxu0 0.0
    %1578 = vmatpush1.msra.mxu0 0.0
    %1579 = vmatprep.subr.mxu0 0.0
    %1580 = vmatpush1.msra.mxu0 0.0
    %1581 = vmatprep.subr.mxu0 0.0
    %1582 = vmatpush1.msra.mxu0 0.0
    %1583 = vmatprep.subr.mxu0 0.0
    %1584 = vmatpush1.msra.mxu0 %v1449
    %1585 = vmatprep.subr.mxu0 0.0
    %1586 = vmatpush1.msra.mxu0 %v1448
    %1587 = vmatprep.subr.mxu0 0.0
    %1588 = vmatpush2.msra.mxu0 0.0
    %1589 = vmatprep.subr.mxu0 0.0
    %1590 = vmatpush2.msra.mxu0 0.0
    %1591 = vmatprep.subr.mxu0 0.0
    %1592 = vmatpush2.msra.mxu0 0.0
    %1593 = vmatprep.subr.mxu0 0.0
    %1594 = vmatpush2.msra.mxu0 0.0
    %1595 = vmatprep.subr.mxu0 0.0
    %1596 = vmatpush2.msra.mxu0 0.0
    %1597 = vmatprep.subr.mxu0 0.0
    %1598 = vmatpush2.msra.mxu0 0.0
    %1599 = vmatprep.subr.mxu0 0.0
    %1600 = vmatpush2.msra.mxu0 0.0
    %1601 = vmatprep.subr.mxu0 0.0
    %1602 = vmatpush2.msra.mxu0 0.0
    %1603 = vmatprep.subr.mxu0 0.0
    %1604 = vmatpush2.msra.mxu0 0.0
    %1605 = vmatprep.subr.mxu0 0.0
    %1606 = vmatpush2.msra.mxu0 0.0
    %1607 = vmatprep.subr.mxu0 0.0
    %1608 = vmatpush2.msra.mxu0 0.0
    %1609 = vmatprep.subr.mxu0 0.0
    %1610 = vmatpush2.msra.mxu0 0.0
    %1611 = vmatprep.subr.mxu0 0.0
    %1612 = vmatpush2.msra.mxu0 0.0
    %1613 = vmatprep.subr.mxu0 0.0
    %1614 = vmatpush2.msra.mxu0 0.0
    %1615 = vmatprep.subr.mxu0 0.0
    %1616 = vmatpush2.msra.mxu0 0.0
    %1617 = vmatprep.subr.mxu0 0.0
    %1618 = vmatpush2.msra.mxu0 0.0
    %1619 = vmatprep.mubr.f32.mxu0 0.0
    %1620 = vmatmul.mubr.f32.gmra.mxu0 %v219
    %v1621 = vpop.f32.mrf.mxu0
    %v1622 = vadd.f32 %v1517, %v1621
    %v1623 = vpop.f32.mrf.mxu0
    %1624 = vmatprep.mubr.f32.mxu0 0.0
    %1625 = vmatmul.mubr.f32.gmra.mxu0 %v222
    %v1626 = vpop.f32.mrf.mxu0
    %v1627 = vadd.f32 %v1522, %v1626
    %v1628 = vpop.f32.mrf.mxu0
    %1629 = vmatprep.mubr.f32.mxu0 0.0
    %1630 = vmatmul.mubr.f32.gmra.mxu0 %v225
    %v1631 = vpop.f32.mrf.mxu0
    %v1632 = vadd.f32 %v1527, %v1631
    %v1633 = vpop.f32.mrf.mxu0
    %1634 = vmatprep.mubr.f32.mxu0 0.0
    %1635 = vmatmul.mubr.f32.gmra.mxu0 %v228
    %v1636 = vpop.f32.mrf.mxu0
    %v1637 = vadd.f32 %v1532, %v1636
    %v1638 = vpop.f32.mrf.mxu0
    %1639 = vmatprep.mubr.f32.mxu0 0.0
    %1640 = vmatmul.mubr.f32.gmra.mxu0 %v231
    %v1641 = vpop.f32.mrf.mxu0
    %v1642 = vadd.f32 %v1537, %v1641
    %v1643 = vpop.f32.mrf.mxu0
    %1644 = vmatprep.mubr.f32.mxu0 0.0
    %1645 = vmatmul.mubr.f32.gmra.mxu0 %v234
    %v1646 = vpop.f32.mrf.mxu0
    %v1647 = vadd.f32 %v1542, %v1646
    %v1648 = vpop.f32.mrf.mxu0
    %1649 = vmatprep.mubr.f32.mxu0 0.0
    %1650 = vmatmul.mubr.f32.gmra.mxu0 %v237
    %v1651 = vpop.f32.mrf.mxu0
    %v1652 = vadd.f32 %v1547, %v1651
    %v1653 = vpop.f32.mrf.mxu0
    %1654 = vmatprep.mubr.f32.mxu0 0.0
    %1655 = vmatmul.mubr.f32.gmra.mxu0 %v240
    %v1656 = vpop.f32.mrf.mxu0
    %v1657 = vadd.f32 %v1552, %v1656
    %v1658 = vpop.f32.mrf.mxu0
    %1659 = vdwg.mxu0
    %1660 = vmatprep.subr.mxu0 0.0
    %1661 = vmatpush1.msra.mxu0 0.0
    %1662 = vmatprep.subr.mxu0 0.0
    %1663 = vmatpush1.msra.mxu0 0.0
    %1664 = vmatprep.subr.mxu0 0.0
    %1665 = vmatpush1.msra.mxu0 0.0
    %1666 = vmatprep.subr.mxu0 0.0
    %1667 = vmatpush1.msra.mxu0 0.0
    %1668 = vmatprep.subr.mxu0 0.0
    %1669 = vmatpush1.msra.mxu0 0.0
    %1670 = vmatprep.subr.mxu0 0.0
    %1671 = vmatpush1.msra.mxu0 0.0
    %1672 = vmatprep.subr.mxu0 0.0
    %1673 = vmatpush1.msra.mxu0 0.0
    %1674 = vmatprep.subr.mxu0 0.0
    %1675 = vmatpush1.msra.mxu0 0.0
    %1676 = vmatprep.subr.mxu0 0.0
    %1677 = vmatpush1.msra.mxu0 0.0
    %1678 = vmatprep.subr.mxu0 0.0
    %1679 = vmatpush1.msra.mxu0 0.0
    %1680 = vmatprep.subr.mxu0 0.0
    %1681 = vmatpush1.msra.mxu0 0.0
    %1682 = vmatprep.subr.mxu0 0.0
    %1683 = vmatpush1.msra.mxu0 0.0
    %1684 = vmatprep.subr.mxu0 0.0
    %1685 = vmatpush1.msra.mxu0 0.0
    %1686 = vmatprep.subr.mxu0 0.0
    %1687 = vmatpush1.msra.mxu0 0.0
    %1688 = vmatprep.subr.mxu0 0.0
    %1689 = vmatpush1.msra.mxu0 %v1445
    %1690 = vmatprep.subr.mxu0 0.0
    %1691 = vmatpush1.msra.mxu0 %v1440
    %1692 = vmatprep.subr.mxu0 0.0
    %1693 = vmatpush2.msra.mxu0 0.0
    %1694 = vmatprep.subr.mxu0 0.0
    %1695 = vmatpush2.msra.mxu0 0.0
    %1696 = vmatprep.subr.mxu0 0.0
    %1697 = vmatpush2.msra.mxu0 0.0
    %1698 = vmatprep.subr.mxu0 0.0
    %1699 = vmatpush2.msra.mxu0 0.0
    %1700 = vmatprep.subr.mxu0 0.0
    %1701 = vmatpush2.msra.mxu0 0.0
    %1702 = vmatprep.subr.mxu0 0.0
    %1703 = vmatpush2.msra.mxu0 0.0
    %1704 = vmatprep.subr.mxu0 0.0
    %1705 = vmatpush2.msra.mxu0 0.0
    %1706 = vmatprep.subr.mxu0 0.0
    %1707 = vmatpush2.msra.mxu0 0.0
    %1708 = vmatprep.subr.mxu0 0.0
    %1709 = vmatpush2.msra.mxu0 0.0
    %1710 = vmatprep.subr.mxu0 0.0
    %1711 = vmatpush2.msra.mxu0 0.0
    %1712 = vmatprep.subr.mxu0 0.0
    %1713 = vmatpush2.msra.mxu0 0.0
    %1714 = vmatprep.subr.mxu0 0.0
    %1715 = vmatpush2.msra.mxu0 0.0
    %1716 = vmatprep.subr.mxu0 0.0
    %1717 = vmatpush2.msra.mxu0 0.0
    %1718 = vmatprep.subr.mxu0 0.0
    %1719 = vmatpush2.msra.mxu0 0.0
    %1720 = vmatprep.subr.mxu0 0.0
    %1721 = vmatpush2.msra.mxu0 0.0
    %1722 = vmatprep.subr.mxu0 0.0
    %1723 = vmatpush2.msra.mxu0 0.0
    %1724 = vmatprep.mubr.f32.mxu0 0.0
    %1725 = vmatmul.mubr.f32.gmra.mxu0 %v434
    %v1726 = vpop.f32.mrf.mxu0
    %v1727 = vadd.f32 0.0, %v1726
    %v1728 = vpop.f32.mrf.mxu0
    %1729 = vmatprep.mubr.f32.mxu0 0.0
    %1730 = vmatmul.mubr.f32.gmra.mxu0 %v437
    %v1731 = vpop.f32.mrf.mxu0
    %v1732 = vadd.f32 0.0, %v1731
    %v1733 = vpop.f32.mrf.mxu0
    %1734 = vmatprep.mubr.f32.mxu0 0.0
    %1735 = vmatmul.mubr.f32.gmra.mxu0 %v440
    %v1736 = vpop.f32.mrf.mxu0
    %v1737 = vadd.f32 0.0, %v1736
    %v1738 = vpop.f32.mrf.mxu0
    %1739 = vmatprep.mubr.f32.mxu0 0.0
    %1740 = vmatmul.mubr.f32.gmra.mxu0 %v443
    %v1741 = vpop.f32.mrf.mxu0
    %v1742 = vadd.f32 0.0, %v1741
    %v1743 = vpop.f32.mrf.mxu0
    %1744 = vmatprep.mubr.f32.mxu0 0.0
    %1745 = vmatmul.mubr.f32.gmra.mxu0 %v446
    %v1746 = vpop.f32.mrf.mxu0
    %v1747 = vadd.f32 0.0, %v1746
    %v1748 = vpop.f32.mrf.mxu0
    %1749 = vmatprep.mubr.f32.mxu0 0.0
    %1750 = vmatmul.mubr.f32.gmra.mxu0 %v449
    %v1751 = vpop.f32.mrf.mxu0
    %v1752 = vadd.f32 0.0, %v1751
    %v1753 = vpop.f32.mrf.mxu0
    %1754 = vmatprep.mubr.f32.mxu0 0.0
    %1755 = vmatmul.mubr.f32.gmra.mxu0 %v452
    %v1756 = vpop.f32.mrf.mxu0
    %v1757 = vadd.f32 0.0, %v1756
    %v1758 = vpop.f32.mrf.mxu0
    %1759 = vmatprep.mubr.f32.mxu0 0.0
    %1760 = vmatmul.mubr.f32.gmra.mxu0 %v455
    %v1761 = vpop.f32.mrf.mxu0
    %v1762 = vadd.f32 0.0, %v1761
    %v1763 = vpop.f32.mrf.mxu0
    %1764 = vdwg.mxu0
    %v1765 = vadd.f32 %v1622, %v1727
    %v1766 = vadd.f32 %v1627, %v1732
    %v1767 = vadd.f32 %v1632, %v1737
    %v1768 = vadd.f32 %v1637, %v1742
    %v1769 = vadd.f32 %v1642, %v1747
    %v1770 = vadd.f32 %v1647, %v1752
    %v1771 = vadd.f32 %v1652, %v1757
    %v1772 = vadd.f32 %v1657, %v1762
    %v1773 = vld [vmem:[%s16] sm:$0x1]
    %v1775 = vlaneseq
    %v1776 = vshrl.u32 %v1775, 7
    %v1777 = vsub.s32 0, %v1776
    %v1778 = vrot.slane %v1773, %v1777
    %v1780 = vadd.f32 %v1765, %v1778
    %v1781 = vadd.f32 %v1766, %v1778
    %v1782 = vadd.f32 %v1767, %v1778
    %v1783 = vadd.f32 %v1768, %v1778
    %v1784 = vadd.f32 %v1769, %v1778
    %v1785 = vadd.f32 %v1770, %v1778
    %v1786 = vadd.f32 %v1771, %v1778
    %v1787 = vadd.f32 %v1772, %v1778
    %1788 = vst.msk [vmem:[%s19] sm:$0xff] %vm217, %v1780
    %1789 = vst.msk [vmem:[%s19 + $0x8] sm:$0xff] %vm217, %v1781
    %1790 = vst.msk [vmem:[%s19 + $0x10] sm:$0xff] %vm217, %v1782
    %1791 = vst.msk [vmem:[%s19 + $0x18] sm:$0xff] %vm217, %v1783
    %1792 = vst.msk [vmem:[%s19 + $0x20] sm:$0xff] %vm217, %v1784
    %1793 = vst.msk [vmem:[%s19 + $0x28] sm:$0xff] %vm217, %v1785
    %1794 = vst.msk [vmem:[%s19 + $0x30] sm:$0xff] %vm217, %v1786
    %1795 = vst.msk [vmem:[%s19 + $0x38] sm:$0xff] %vm217, %v1787
    // Predicated region
    $region70: #{gcn_block_forward.1} parent=1 // pred_check
      _
    $region71: #{gcn_block_forward.1} parent=1 // pred_check_branch
      %1797 = sbr.rel (0) target = $region73
    $region72: #{gcn_block_forward.1} parent=1 // pred_region
      %s1799 = ssub.s32 128, 128
      %1800 = vsyncadd [#allocation3], %s1799
      %s1802 = sshll.u32 [#allocation2], 4
      %s1803 = int_to_ptr.vmem [resolvable:$true] %s1802
      %1805 = dma.vmem_to_hbm [thread:$0]  %s1803, 128, %s17, [#allocation3]
    $region73: #{gcn_block_forward.1} parent=1 // pred_fallthru
      _
    // Predicated region
    $region74: #{gcn_block_forward.1} parent=1 // pred_check
      _
    $region75: #{gcn_block_forward.1} parent=1 // pred_check_branch
      %1807 = sbr.rel (0) target = $region77
    $region76: #{gcn_block_forward.1} parent=1 // pred_region
      %s1809 = ssub.s32 256, 256
      %1810 = vsyncadd [#allocation5], %s1809
      %s1811 = sshll.u32 [#allocation4], 4
      %s1812 = int_to_ptr.vmem [resolvable:$true] %s1811
      %1817 = dma.vmem_to_hbm [thread:$0]  %s1812, 256, %s18, [#allocation5], 128, 128, 8
    $region77: #{gcn_block_forward.1} parent=1 // pred_fallthru
      _
    // Predicated region
    $region78: #{gcn_block_forward.1} parent=1 // pred_check
      _
    $region79: #{gcn_block_forward.1} parent=1 // pred_check_branch
      %1819 = sbr.rel (0) target = $region81
    $region80: #{gcn_block_forward.1} parent=1 // pred_region
      _
    $region81: #{gcn_block_forward.1} parent=1 // pred_fallthru
      _
    // Predicated region
    $region82: #{gcn_block_forward.1} parent=1 // pred_check
      _
    $region83: #{gcn_block_forward.1} parent=1 // pred_check_branch
      %1821 = sbr.rel (0) target = $region85
    $region84: #{gcn_block_forward.1} parent=1 // pred_region
      %1822 = dma.done [#allocation3], 128
    $region85: #{gcn_block_forward.1} parent=1 // pred_fallthru
      _
    // Predicated region
    $region86: #{gcn_block_forward.1} parent=1 // pred_check
      _
    $region87: #{gcn_block_forward.1} parent=1 // pred_check_branch
      %1824 = sbr.rel (0) target = $region89
    $region88: #{gcn_block_forward.1} parent=1 // pred_region
      %1825 = dma.done [#allocation5], 256
    $region89: #{gcn_block_forward.1} parent=1 // pred_fallthru
      _
    // Predicated region
    $region90: #{gcn_block_forward.1} parent=1 // pred_check
      _
    $region91: #{gcn_block_forward.1} parent=1 // pred_check_branch
      %1827 = sbr.rel (0) target = $region93
    $region92: #{gcn_block_forward.1} parent=1 // pred_region
      _
    $region93: #{gcn_block_forward.1} parent=1 // pred_fallthru
      _
    %1828 = vsyncpa [#allocation3], 1
    %1829 = vsyncpa [#allocation5], 1

</llo_original>
